<compile_context>
chip_gen: v7x
topology: tpu7x:2x2x1
jax: 0.10.0
libtpu: 0.0.40
codegen_flags: <defaults>
</compile_context>

<pallas_src>
import functools

import jax
import jax.numpy as jnp
from jax import lax
from jax.experimental import pallas as pl
from jax.experimental.pallas import tpu as pltpu


# ----------------------------------------------------------------------------
# Fused kernel (one grid step == one batch block):
#   pad -> conv1 (one MXU matmul) -> BN1+ReLU6 + border mask ->
#   depthwise conv2 (VPU, flat taps) -> BN2+ReLU6 -> lane-dense store.
# ----------------------------------------------------------------------------
def _stem_kernel(x_ref, w1_ref, b1_ref, mask_ref, w2_ref, b2_ref, o_ref,
                 xpf_ref, p_ref, y1p_ref,
                 *, cin, cout, s1, ho1, wo1, ho2, b_blk):
    hg, wg = ho1 + 4, wo1 + 4          # conv1-output grid + 2-wide zero border
    npos = hg * wg                     # flat positions per image
    qtot = b_blk * npos                # flat positions per batch block
    margin = 2 * wg + 2                # covers the largest |flat tap offset|

    # ---- stage 0: zero-bordered, channel-major, flat input grid in VMEM ------
    # Re-zeroed every step (a handful of vregs): the pad ring feeds valid
    # outputs and a program_id==0-gated memset is unsafe with per-core scratch
    # under a "parallel" grid axis (megacore / v7x).
    xpf_ref[...] = jnp.zeros_like(xpf_ref)
    # For s1 == 1 the grid holds the padding=2 input; for s1 == 2 it holds the
    # even-coordinate subsample (dilation-2 taps at stride 2 land only on even
    # coordinates), turning conv1 into a dense stride-1 3x3 on this grid.
    # TODO(synk): at large H*W replace the per-row copies with a strided DMA
    # (memory_space=pl.ANY input + pltpu.make_async_copy into a 3-D scratch).
    for b in range(b_blk):
        xb = x_ref[b]                                            # (cin, h, w)
        base = margin + b * npos
        for r in range(ho1):
            row = xb[:, r * s1, :]                               # (cin, w)
            if s1 != 1:
                row = lax.slice(row, (0, 0), (cin, (wo1 - 1) * s1 + 1), (1, s1))
            dst = base + (r + 2) * wg + 2
            xpf_ref[:, dst:dst + wo1] = row

    # ---- stage 1: implicit im2col: 9 constant-offset flat slices -------------
    # P[(kh*3+kw)*cin + ci, :] = grid[ci, q + off(kh, kw)] for every position q.
    # Taps of *valid* output positions never leave their own image's region;
    # border positions read wrapped garbage but are masked to zero in stage 2.
    for kh in range(3):
        for kw in range(3):
            t = kh * 3 + kw
            off = ((2 * kh - 2) // s1) * wg + (2 * kw - 2) // s1
            p_ref[t * cin:(t + 1) * cin, :] = (
                xpf_ref[:, margin + off: margin + off + qtot])

    # ---- stage 2: conv1 as ONE MXU matmul over the whole batch block ---------
    # + fused BN1 bias + ReLU6; the border mask zeroes the invalid positions so
    # the masked grid *is* conv2's padding=2 input (same pitch wg) - no
    # re-layout, no HBM round trip.  (BN1 scale is folded into w1 on the host.)
    y1 = jnp.dot(w1_ref[...], p_ref[...], preferred_element_type=jnp.float32)
    y1p_ref[:, :qtot] = jnp.clip(y1 + b1_ref[...], 0.0, 6.0) * mask_ref[...]
    # Tiny tail margin: only read by tap slices of positions that the wrapper
    # drops; zero it once per step for determinism.
    y1p_ref[:, qtot:qtot + margin] = jnp.zeros((cout, margin), jnp.float32)

    # ---- stage 3: depthwise 3x3 conv2 on the VPU, lane-dense flat taps -------
    # (s2 == 1 path; reduction % 4 == 0 falls back to XLA in the wrapper.)
    acc = jnp.zeros((cout, qtot), jnp.float32)
    for kh in range(3):
        for kw in range(3):
            t = kh * 3 + kw
            off = kh * wg + kw
            acc = acc + w2_ref[:, t:t + 1] * y1p_ref[:, off: off + qtot]
    y2 = jnp.clip(acc + b2_ref[...], 0.0, 6.0)

    # ---- stage 4: lane-dense per-image stores ---------------------------------
    # Store rows [0, ho2) at full pitch wg; the wrapper drops the wg - wo2
    # garbage columns with a cheap XLA slice.
    for b in range(b_blk):
        o_ref[b] = y2[:, b * npos: b * npos + ho2 * wg].astype(o_ref.dtype)


def _fold_bn(gamma, beta, mean, var, conv_bias, eps=1e-5):
    scale = gamma / jnp.sqrt(var + eps)
    bias = beta + (conv_bias - mean) * scale
    return scale, bias


def stem_forward(x_nchw, params, *, reduction=1, batch_block=4):
    """Forward pass of Stem. x_nchw: (N, Cin, H, W) f32 -> (N, Cout, Ho2, Wo2)."""
    s1 = 2 if reduction % 2 == 0 else 1
    s2 = 2 if reduction % 4 == 0 else 1

    if s2 != 1:
        # TODO(synk): the stride-2 depthwise stage needs a strided tap gather;
        # fall back to the XLA path for reduction % 4 == 0 (not exercised here).
        return stem_reference(x_nchw, params, reduction=reduction)

    w1 = params["w1"]                         # (Cout, Cin, 3, 3)  OIHW
    w2 = params["w2"]                         # (Cout, 1, 3, 3)    depthwise
    cout, cin = w1.shape[0], w1.shape[1]
    n, _, h, w = x_nchw.shape

    ho1 = (h - 1) // s1 + 1                   # dilated 3x3 (effective 5), pad 2
    wo1 = (w - 1) // s1 + 1
    ho2, wo2 = ho1 + 2, wo1 + 2               # 3x3, padding 2, stride 1
    hg, wg = ho1 + 4, wo1 + 4
    npos = hg * wg
    margin = 2 * wg + 2

    # Fold BN scale into conv weights and BN shift into the bias (host side).
    scale1, bias1 = _fold_bn(params["bn1_gamma"], params["bn1_beta"],
                             params["bn1_mean"], params["bn1_var"], params["b1c"])
    scale2, bias2 = _fold_bn(params["bn2_gamma"], params["bn2_beta"],
                             params["bn2_mean"], params["bn2_var"], params["b2c"])
    # conv1 weight matrix: (cout, 9*cin), column index = (kh*3+kw)*cin + ci.
    w1m = (w1 * scale1[:, None, None, None]).transpose(0, 2, 3, 1).reshape(cout, 9 * cin)
    b1m = bias1.reshape(cout, 1)
    w2m = (w2[:, 0] * scale2[:, None, None]).reshape(cout, 9)
    b2m = bias2.reshape(cout, 1)

    # Batch blocking: amortize per-step overhead, but keep >= 2 grid steps when
    # n >= 2 so both TensorCores get work on dual-core parts (v7x).
    b_blk = max(1, min(batch_block, pl.cdiv(n, 2)))
    nb = pl.cdiv(n, b_blk)
    n_pad = nb * b_blk
    if n_pad != n:
        x_nchw = jnp.concatenate(
            [x_nchw, jnp.zeros((n_pad - n, cin, h, w), x_nchw.dtype)], axis=0)

    # Border mask: 1 on conv1's valid output positions, 0 on the 2-wide border
    # (which then doubles as conv2's zero padding).  Tiled per image.
    mask2d = jnp.zeros((hg, wg), jnp.float32).at[2:2 + ho1, 2:2 + wo1].set(1.0)
    mask = jnp.tile(mask2d.reshape(-1), b_blk).reshape(1, b_blk * npos)

    kernel = functools.partial(_stem_kernel, cin=cin, cout=cout, s1=s1,
                               ho1=ho1, wo1=wo1, ho2=ho2, b_blk=b_blk)

    # TODO(synk): for large resolutions add a row-tile grid axis (halo rows via
    # index_map) so per-step scratch stays well inside v7x's 64 MiB VMEM.
    out = pl.pallas_call(
        kernel,
        out_shape=jax.ShapeDtypeStruct((n_pad, cout, ho2 * wg), jnp.float32),
        grid_spec=pltpu.PrefetchScalarGridSpec(
            num_scalar_prefetch=0,
            grid=(nb,),
            in_specs=[
                pl.BlockSpec((b_blk, cin, h, w), lambda i: (i, 0, 0, 0)),
                pl.BlockSpec((cout, 9 * cin), lambda i: (0, 0)),
                pl.BlockSpec((cout, 1), lambda i: (0, 0)),
                pl.BlockSpec((1, b_blk * npos), lambda i: (0, 0)),
                pl.BlockSpec((cout, 9), lambda i: (0, 0)),
                pl.BlockSpec((cout, 1), lambda i: (0, 0)),
            ],
            out_specs=pl.BlockSpec((b_blk, cout, ho2 * wg), lambda i: (i, 0, 0)),
            scratch_shapes=[
                pltpu.VMEM((cin, 2 * margin + b_blk * npos), jnp.float32),  # padded flat input
                pltpu.VMEM((9 * cin, b_blk * npos), jnp.float32),           # im2col matrix P
                pltpu.VMEM((cout, b_blk * npos + margin), jnp.float32),     # conv1 act (conv2 input)
            ],
        ),
        compiler_params=pltpu.CompilerParams(
            dimension_semantics=("parallel",),
            vmem_limit_bytes=32 * 1024 * 1024,
        ),
    )(x_nchw, w1m, b1m, mask, w2m, b2m)

    # Layout plumbing only: drop the pitch padding and the batch padding.
    return out.reshape(n_pad, cout, ho2, wg)[:n, :, :, :wo2]


# ----------------------------------------------------------------------------
# Pure-JAX reference (correctness check only)
# ----------------------------------------------------------------------------
def stem_reference(x, params, *, reduction=1):
    s1 = 2 if reduction % 2 == 0 else 1
    s2 = 2 if reduction % 4 == 0 else 1
    eps = 1e-5
    dn = ("NCHW", "OIHW", "NCHW")
    prec = lax.Precision.HIGHEST

    y = lax.conv_general_dilated(x, params["w1"], (s1, s1), [(2, 2), (2, 2)],
                                 rhs_dilation=(2, 2), dimension_numbers=dn,
                                 precision=prec)
    y = y + params["b1c"].reshape(1, -1, 1, 1)
    g, b, m, v = (params["bn1_gamma"], params["bn1_beta"],
                  params["bn1_mean"], params["bn1_var"])
    y = (y - m.reshape(1, -1, 1, 1)) / jnp.sqrt(v.reshape(1, -1, 1, 1) + eps) \
        * g.reshape(1, -1, 1, 1) + b.reshape(1, -1, 1, 1)
    y = jnp.clip(y, 0.0, 6.0)

    cout = params["w2"].shape[0]
    y = lax.conv_general_dilated(y, params["w2"], (s2, s2), [(2, 2), (2, 2)],
                                 dimension_numbers=dn, feature_group_count=cout,
                                 precision=prec)
    y = y + params["b2c"].reshape(1, -1, 1, 1)
    g, b, m, v = (params["bn2_gamma"], params["bn2_beta"],
                  params["bn2_mean"], params["bn2_var"])
    y = (y - m.reshape(1, -1, 1, 1)) / jnp.sqrt(v.reshape(1, -1, 1, 1) + eps) \
        * g.reshape(1, -1, 1, 1) + b.reshape(1, -1, 1, 1)
    y = jnp.clip(y, 0.0, 6.0)
    return y


if __name__ == "__main__":
    # Module config: Stem(resolution=16, in_channels=4, out_channels=8, reduction=1)
    N, CIN, COUT, RES = 2, 4, 8, 16
    REDUCTION = 1  # -> stride1 = stride2 = 1

    key = jax.random.PRNGKey(0)
    ks = jax.random.split(key, 12)
    x = jax.random.normal(ks[0], (N, CIN, RES, RES), jnp.float32)

    params = {
        "w1": jax.random.normal(ks[1], (COUT, CIN, 3, 3), jnp.float32) * 0.1,
        "b1c": jax.random.normal(ks[10], (COUT,), jnp.float32) * 0.1,
        "bn1_gamma": jax.random.uniform(ks[2], (COUT,), jnp.float32, 0.5, 1.5),
        "bn1_beta": jax.random.normal(ks[3], (COUT,), jnp.float32) * 0.1,
        "bn1_mean": jax.random.normal(ks[4], (COUT,), jnp.float32) * 0.1,
        "bn1_var": jax.random.uniform(ks[5], (COUT,), jnp.float32, 0.5, 1.5),
        "w2": jax.random.normal(ks[6], (COUT, 1, 3, 3), jnp.float32) * 0.1,
        "b2c": jax.random.normal(ks[11], (COUT,), jnp.float32) * 0.1,
        "bn2_gamma": jax.random.uniform(ks[7], (COUT,), jnp.float32, 0.5, 1.5),
        "bn2_beta": jax.random.normal(ks[8], (COUT,), jnp.float32) * 0.1,
        "bn2_mean": jax.random.normal(ks[9], (COUT,), jnp.float32) * 0.1,
        "bn2_var": jnp.ones((COUT,), jnp.float32),
    }

    out = jax.block_until_ready(stem_forward(x, params, reduction=REDUCTION))

    ref = stem_reference(x, params, reduction=REDUCTION)
    assert out.shape == ref.shape, (out.shape, ref.shape)
    max_err = float(jnp.max(jnp.abs(out - ref)))
    # Tolerance leaves headroom for the MXU's reduced-precision f32 matmul
    # passes; structural bugs produce errors orders of magnitude larger.
    assert max_err < 5e-3, f"max abs error {max_err}"

    print("KERNEL_OK")
</pallas_src>

<mosaic_0001>
module attributes {stable_mosaic.version = 11 : i64} {
  func.func @_stem_kernel(%arg0: i32, %arg1: memref<1x4x16x16xf32, #tpu.memory_space<vmem>>, %arg2: memref<8x36xf32, #tpu.memory_space<vmem>>, %arg3: memref<8x1xf32, #tpu.memory_space<vmem>>, %arg4: memref<1x400xf32, #tpu.memory_space<vmem>>, %arg5: memref<8x9xf32, #tpu.memory_space<vmem>>, %arg6: memref<8x1xf32, #tpu.memory_space<vmem>>, %arg7: memref<1x8x360xf32, #tpu.memory_space<vmem>>, %arg8: memref<4x484xf32, #tpu.memory_space<vmem>>, %arg9: memref<36x400xf32, #tpu.memory_space<vmem>>, %arg10: memref<8x442xf32, #tpu.memory_space<vmem>>) attributes {dimension_semantics = [#tpu.dimension_semantics<parallel>], iteration_bounds = array<i64: 2>, scalar_prefetch = 0 : i64, scratch_operands = 3 : i64, tpu.core_type = #tpu.core_type<tc>, window_params = [{transform_indices = @transform_0, window_bounds = array<i64: 1, 4, 16, 16>}, {pipeline_mode = #tpu.pipeline_mode<synchronous>, transform_indices = @transform_1, window_bounds = array<i64: 8, 36>}, {pipeline_mode = #tpu.pipeline_mode<synchronous>, transform_indices = @transform_2, window_bounds = array<i64: 8, 1>}, {pipeline_mode = #tpu.pipeline_mode<synchronous>, transform_indices = @transform_3, window_bounds = array<i64: 1, 400>}, {pipeline_mode = #tpu.pipeline_mode<synchronous>, transform_indices = @transform_4, window_bounds = array<i64: 8, 9>}, {pipeline_mode = #tpu.pipeline_mode<synchronous>, transform_indices = @transform_5, window_bounds = array<i64: 8, 1>}, {transform_indices = @transform_6, window_bounds = array<i64: 1, 8, 360>}]} {
    %cst = arith.constant 0.000000e+00 : f32
    %0 = vector.broadcast %cst : f32 to vector<4x484xf32>
    %c0 = arith.constant 0 : index
    %c0_0 = arith.constant 0 : index
    %1 = vector.load %arg8[%c0, %c0_0] : memref<4x484xf32, #tpu.memory_space<vmem>>, vector<4x484xf32>
    tpu.vector_store %arg8[%c0, %c0_0], %0 {strides = array<i32>} : memref<4x484xf32, #tpu.memory_space<vmem>>, vector<4x484xf32>,
    %c0_1 = arith.constant 0 : index
    %c0_2 = arith.constant 0 : index
    %c0_3 = arith.constant 0 : index
    %c0_4 = arith.constant 0 : index
    %2 = vector.load %arg1[%c0_1, %c0_2, %c0_3, %c0_4] : memref<1x4x16x16xf32, #tpu.memory_space<vmem>>, vector<1x4x16x16xf32>
    %3 = vector.shape_cast %2 : vector<1x4x16x16xf32> to vector<4x16x16xf32>
    %4 = vector.extract_strided_slice %3 {offsets = [0, 0, 0], sizes = [4, 1, 16], strides = [1, 1, 1]} : vector<4x16x16xf32> to vector<4x1x16xf32>
    %5 = vector.shape_cast %4 : vector<4x1x16xf32> to vector<4x16xf32>
    %c0_5 = arith.constant 0 : index
    %c84 = arith.constant 84 : index
    %6 = vector.load %arg8[%c0_5, %c84] : memref<4x484xf32, #tpu.memory_space<vmem>>, vector<4x16xf32>
    tpu.vector_store %arg8[%c0_5, %c84], %5 {strides = array<i32>} : memref<4x484xf32, #tpu.memory_space<vmem>>, vector<4x16xf32>,
    %7 = vector.extract_strided_slice %3 {offsets = [0, 1, 0], sizes = [4, 1, 16], strides = [1, 1, 1]} : vector<4x16x16xf32> to vector<4x1x16xf32>
    %8 = vector.shape_cast %7 : vector<4x1x16xf32> to vector<4x16xf32>
    %c0_6 = arith.constant 0 : index
    %c104 = arith.constant 104 : index
    %9 = vector.load %arg8[%c0_6, %c104] : memref<4x484xf32, #tpu.memory_space<vmem>>, vector<4x16xf32>
    tpu.vector_store %arg8[%c0_6, %c104], %8 {strides = array<i32>} : memref<4x484xf32, #tpu.memory_space<vmem>>, vector<4x16xf32>,
    %10 = vector.extract_strided_slice %3 {offsets = [0, 2, 0], sizes = [4, 1, 16], strides = [1, 1, 1]} : vector<4x16x16xf32> to vector<4x1x16xf32>
    %11 = vector.shape_cast %10 : vector<4x1x16xf32> to vector<4x16xf32>
    %c0_7 = arith.constant 0 : index
    %c124 = arith.constant 124 : index
    %12 = vector.load %arg8[%c0_7, %c124] : memref<4x484xf32, #tpu.memory_space<vmem>>, vector<4x16xf32>
    tpu.vector_store %arg8[%c0_7, %c124], %11 {strides = array<i32>} : memref<4x484xf32, #tpu.memory_space<vmem>>, vector<4x16xf32>,
    %13 = vector.extract_strided_slice %3 {offsets = [0, 3, 0], sizes = [4, 1, 16], strides = [1, 1, 1]} : vector<4x16x16xf32> to vector<4x1x16xf32>
    %14 = vector.shape_cast %13 : vector<4x1x16xf32> to vector<4x16xf32>
    %c0_8 = arith.constant 0 : index
    %c144 = arith.constant 144 : index
    %15 = vector.load %arg8[%c0_8, %c144] : memref<4x484xf32, #tpu.memory_space<vmem>>, vector<4x16xf32>
    tpu.vector_store %arg8[%c0_8, %c144], %14 {strides = array<i32>} : memref<4x484xf32, #tpu.memory_space<vmem>>, vector<4x16xf32>,
    %16 = vector.extract_strided_slice %3 {offsets = [0, 4, 0], sizes = [4, 1, 16], strides = [1, 1, 1]} : vector<4x16x16xf32> to vector<4x1x16xf32>
    %17 = vector.shape_cast %16 : vector<4x1x16xf32> to vector<4x16xf32>
    %c0_9 = arith.constant 0 : index
    %c164 = arith.constant 164 : index
    %18 = vector.load %arg8[%c0_9, %c164] : memref<4x484xf32, #tpu.memory_space<vmem>>, vector<4x16xf32>
    tpu.vector_store %arg8[%c0_9, %c164], %17 {strides = array<i32>} : memref<4x484xf32, #tpu.memory_space<vmem>>, vector<4x16xf32>,
    %19 = vector.extract_strided_slice %3 {offsets = [0, 5, 0], sizes = [4, 1, 16], strides = [1, 1, 1]} : vector<4x16x16xf32> to vector<4x1x16xf32>
    %20 = vector.shape_cast %19 : vector<4x1x16xf32> to vector<4x16xf32>
    %c0_10 = arith.constant 0 : index
    %c184 = arith.constant 184 : index
    %21 = vector.load %arg8[%c0_10, %c184] : memref<4x484xf32, #tpu.memory_space<vmem>>, vector<4x16xf32>
    tpu.vector_store %arg8[%c0_10, %c184], %20 {strides = array<i32>} : memref<4x484xf32, #tpu.memory_space<vmem>>, vector<4x16xf32>,
    %22 = vector.extract_strided_slice %3 {offsets = [0, 6, 0], sizes = [4, 1, 16], strides = [1, 1, 1]} : vector<4x16x16xf32> to vector<4x1x16xf32>
    %23 = vector.shape_cast %22 : vector<4x1x16xf32> to vector<4x16xf32>
    %c0_11 = arith.constant 0 : index
    %c204 = arith.constant 204 : index
    %24 = vector.load %arg8[%c0_11, %c204] : memref<4x484xf32, #tpu.memory_space<vmem>>, vector<4x16xf32>
    tpu.vector_store %arg8[%c0_11, %c204], %23 {strides = array<i32>} : memref<4x484xf32, #tpu.memory_space<vmem>>, vector<4x16xf32>,
    %25 = vector.extract_strided_slice %3 {offsets = [0, 7, 0], sizes = [4, 1, 16], strides = [1, 1, 1]} : vector<4x16x16xf32> to vector<4x1x16xf32>
    %26 = vector.shape_cast %25 : vector<4x1x16xf32> to vector<4x16xf32>
    %c0_12 = arith.constant 0 : index
    %c224 = arith.constant 224 : index
    %27 = vector.load %arg8[%c0_12, %c224] : memref<4x484xf32, #tpu.memory_space<vmem>>, vector<4x16xf32>
    tpu.vector_store %arg8[%c0_12, %c224], %26 {strides = array<i32>} : memref<4x484xf32, #tpu.memory_space<vmem>>, vector<4x16xf32>,
    %28 = vector.extract_strided_slice %3 {offsets = [0, 8, 0], sizes = [4, 1, 16], strides = [1, 1, 1]} : vector<4x16x16xf32> to vector<4x1x16xf32>
    %29 = vector.shape_cast %28 : vector<4x1x16xf32> to vector<4x16xf32>
    %c0_13 = arith.constant 0 : index
    %c244 = arith.constant 244 : index
    %30 = vector.load %arg8[%c0_13, %c244] : memref<4x484xf32, #tpu.memory_space<vmem>>, vector<4x16xf32>
    tpu.vector_store %arg8[%c0_13, %c244], %29 {strides = array<i32>} : memref<4x484xf32, #tpu.memory_space<vmem>>, vector<4x16xf32>,
    %31 = vector.extract_strided_slice %3 {offsets = [0, 9, 0], sizes = [4, 1, 16], strides = [1, 1, 1]} : vector<4x16x16xf32> to vector<4x1x16xf32>
    %32 = vector.shape_cast %31 : vector<4x1x16xf32> to vector<4x16xf32>
    %c0_14 = arith.constant 0 : index
    %c264 = arith.constant 264 : index
    %33 = vector.load %arg8[%c0_14, %c264] : memref<4x484xf32, #tpu.memory_space<vmem>>, vector<4x16xf32>
    tpu.vector_store %arg8[%c0_14, %c264], %32 {strides = array<i32>} : memref<4x484xf32, #tpu.memory_space<vmem>>, vector<4x16xf32>,
    %34 = vector.extract_strided_slice %3 {offsets = [0, 10, 0], sizes = [4, 1, 16], strides = [1, 1, 1]} : vector<4x16x16xf32> to vector<4x1x16xf32>
    %35 = vector.shape_cast %34 : vector<4x1x16xf32> to vector<4x16xf32>
    %c0_15 = arith.constant 0 : index
    %c284 = arith.constant 284 : index
    %36 = vector.load %arg8[%c0_15, %c284] : memref<4x484xf32, #tpu.memory_space<vmem>>, vector<4x16xf32>
    tpu.vector_store %arg8[%c0_15, %c284], %35 {strides = array<i32>} : memref<4x484xf32, #tpu.memory_space<vmem>>, vector<4x16xf32>,
    %37 = vector.extract_strided_slice %3 {offsets = [0, 11, 0], sizes = [4, 1, 16], strides = [1, 1, 1]} : vector<4x16x16xf32> to vector<4x1x16xf32>
    %38 = vector.shape_cast %37 : vector<4x1x16xf32> to vector<4x16xf32>
    %c0_16 = arith.constant 0 : index
    %c304 = arith.constant 304 : index
    %39 = vector.load %arg8[%c0_16, %c304] : memref<4x484xf32, #tpu.memory_space<vmem>>, vector<4x16xf32>
    tpu.vector_store %arg8[%c0_16, %c304], %38 {strides = array<i32>} : memref<4x484xf32, #tpu.memory_space<vmem>>, vector<4x16xf32>,
    %40 = vector.extract_strided_slice %3 {offsets = [0, 12, 0], sizes = [4, 1, 16], strides = [1, 1, 1]} : vector<4x16x16xf32> to vector<4x1x16xf32>
    %41 = vector.shape_cast %40 : vector<4x1x16xf32> to vector<4x16xf32>
    %c0_17 = arith.constant 0 : index
    %c324 = arith.constant 324 : index
    %42 = vector.load %arg8[%c0_17, %c324] : memref<4x484xf32, #tpu.memory_space<vmem>>, vector<4x16xf32>
    tpu.vector_store %arg8[%c0_17, %c324], %41 {strides = array<i32>} : memref<4x484xf32, #tpu.memory_space<vmem>>, vector<4x16xf32>,
    %43 = vector.extract_strided_slice %3 {offsets = [0, 13, 0], sizes = [4, 1, 16], strides = [1, 1, 1]} : vector<4x16x16xf32> to vector<4x1x16xf32>
    %44 = vector.shape_cast %43 : vector<4x1x16xf32> to vector<4x16xf32>
    %c0_18 = arith.constant 0 : index
    %c344 = arith.constant 344 : index
    %45 = vector.load %arg8[%c0_18, %c344] : memref<4x484xf32, #tpu.memory_space<vmem>>, vector<4x16xf32>
    tpu.vector_store %arg8[%c0_18, %c344], %44 {strides = array<i32>} : memref<4x484xf32, #tpu.memory_space<vmem>>, vector<4x16xf32>,
    %46 = vector.extract_strided_slice %3 {offsets = [0, 14, 0], sizes = [4, 1, 16], strides = [1, 1, 1]} : vector<4x16x16xf32> to vector<4x1x16xf32>
    %47 = vector.shape_cast %46 : vector<4x1x16xf32> to vector<4x16xf32>
    %c0_19 = arith.constant 0 : index
    %c364 = arith.constant 364 : index
    %48 = vector.load %arg8[%c0_19, %c364] : memref<4x484xf32, #tpu.memory_space<vmem>>, vector<4x16xf32>
    tpu.vector_store %arg8[%c0_19, %c364], %47 {strides = array<i32>} : memref<4x484xf32, #tpu.memory_space<vmem>>, vector<4x16xf32>,
    %49 = vector.extract_strided_slice %3 {offsets = [0, 15, 0], sizes = [4, 1, 16], strides = [1, 1, 1]} : vector<4x16x16xf32> to vector<4x1x16xf32>
    %50 = vector.shape_cast %49 : vector<4x1x16xf32> to vector<4x16xf32>
    %c0_20 = arith.constant 0 : index
    %c384 = arith.constant 384 : index
    %51 = vector.load %arg8[%c0_20, %c384] : memref<4x484xf32, #tpu.memory_space<vmem>>, vector<4x16xf32>
    tpu.vector_store %arg8[%c0_20, %c384], %50 {strides = array<i32>} : memref<4x484xf32, #tpu.memory_space<vmem>>, vector<4x16xf32>,
    %c0_21 = arith.constant 0 : index
    %c0_22 = arith.constant 0 : index
    %52 = vector.load %arg8[%c0_21, %c0_22] : memref<4x484xf32, #tpu.memory_space<vmem>>, vector<4x400xf32>
    %c0_23 = arith.constant 0 : index
    %c0_24 = arith.constant 0 : index
    %53 = vector.load %arg9[%c0_23, %c0_24] : memref<36x400xf32, #tpu.memory_space<vmem>>, vector<4x400xf32>
    tpu.vector_store %arg9[%c0_23, %c0_24], %52 {strides = array<i32>} : memref<36x400xf32, #tpu.memory_space<vmem>>, vector<4x400xf32>,
    %c0_25 = arith.constant 0 : index
    %c2 = arith.constant 2 : index
    %54 = vector.load %arg8[%c0_25, %c2] : memref<4x484xf32, #tpu.memory_space<vmem>>, vector<4x400xf32>
    %c4 = arith.constant 4 : index
    %c0_26 = arith.constant 0 : index
    %55 = vector.load %arg9[%c4, %c0_26] : memref<36x400xf32, #tpu.memory_space<vmem>>, vector<4x400xf32>
    tpu.vector_store %arg9[%c4, %c0_26], %54 {strides = array<i32>} : memref<36x400xf32, #tpu.memory_space<vmem>>, vector<4x400xf32>,
    %c0_27 = arith.constant 0 : index
    %c4_28 = arith.constant 4 : index
    %56 = vector.load %arg8[%c0_27, %c4_28] : memref<4x484xf32, #tpu.memory_space<vmem>>, vector<4x400xf32>
    %c8 = arith.constant 8 : index
    %c0_29 = arith.constant 0 : index
    %57 = vector.load %arg9[%c8, %c0_29] : memref<36x400xf32, #tpu.memory_space<vmem>>, vector<4x400xf32>
    tpu.vector_store %arg9[%c8, %c0_29], %56 {strides = array<i32>} : memref<36x400xf32, #tpu.memory_space<vmem>>, vector<4x400xf32>,
    %c0_30 = arith.constant 0 : index
    %c40 = arith.constant 40 : index
    %58 = vector.load %arg8[%c0_30, %c40] : memref<4x484xf32, #tpu.memory_space<vmem>>, vector<4x400xf32>
    %c12 = arith.constant 12 : index
    %c0_31 = arith.constant 0 : index
    %59 = vector.load %arg9[%c12, %c0_31] : memref<36x400xf32, #tpu.memory_space<vmem>>, vector<4x400xf32>
    tpu.vector_store %arg9[%c12, %c0_31], %58 {strides = array<i32>} : memref<36x400xf32, #tpu.memory_space<vmem>>, vector<4x400xf32>,
    %c0_32 = arith.constant 0 : index
    %c42 = arith.constant 42 : index
    %60 = vector.load %arg8[%c0_32, %c42] : memref<4x484xf32, #tpu.memory_space<vmem>>, vector<4x400xf32>
    %c16 = arith.constant 16 : index
    %c0_33 = arith.constant 0 : index
    %61 = vector.load %arg9[%c16, %c0_33] : memref<36x400xf32, #tpu.memory_space<vmem>>, vector<4x400xf32>
    tpu.vector_store %arg9[%c16, %c0_33], %60 {strides = array<i32>} : memref<36x400xf32, #tpu.memory_space<vmem>>, vector<4x400xf32>,
    %c0_34 = arith.constant 0 : index
    %c44 = arith.constant 44 : index
    %62 = vector.load %arg8[%c0_34, %c44] : memref<4x484xf32, #tpu.memory_space<vmem>>, vector<4x400xf32>
    %c20 = arith.constant 20 : index
    %c0_35 = arith.constant 0 : index
    %63 = vector.load %arg9[%c20, %c0_35] : memref<36x400xf32, #tpu.memory_space<vmem>>, vector<4x400xf32>
    tpu.vector_store %arg9[%c20, %c0_35], %62 {strides = array<i32>} : memref<36x400xf32, #tpu.memory_space<vmem>>, vector<4x400xf32>,
    %c0_36 = arith.constant 0 : index
    %c80 = arith.constant 80 : index
    %64 = vector.load %arg8[%c0_36, %c80] : memref<4x484xf32, #tpu.memory_space<vmem>>, vector<4x400xf32>
    %c24 = arith.constant 24 : index
    %c0_37 = arith.constant 0 : index
    %65 = vector.load %arg9[%c24, %c0_37] : memref<36x400xf32, #tpu.memory_space<vmem>>, vector<4x400xf32>
    tpu.vector_store %arg9[%c24, %c0_37], %64 {strides = array<i32>} : memref<36x400xf32, #tpu.memory_space<vmem>>, vector<4x400xf32>,
    %c0_38 = arith.constant 0 : index
    %c82 = arith.constant 82 : index
    %66 = vector.load %arg8[%c0_38, %c82] : memref<4x484xf32, #tpu.memory_space<vmem>>, vector<4x400xf32>
    %c28 = arith.constant 28 : index
    %c0_39 = arith.constant 0 : index
    %67 = vector.load %arg9[%c28, %c0_39] : memref<36x400xf32, #tpu.memory_space<vmem>>, vector<4x400xf32>
    tpu.vector_store %arg9[%c28, %c0_39], %66 {strides = array<i32>} : memref<36x400xf32, #tpu.memory_space<vmem>>, vector<4x400xf32>,
    %c0_40 = arith.constant 0 : index
    %c84_41 = arith.constant 84 : index
    %68 = vector.load %arg8[%c0_40, %c84_41] : memref<4x484xf32, #tpu.memory_space<vmem>>, vector<4x400xf32>
    %c32 = arith.constant 32 : index
    %c0_42 = arith.constant 0 : index
    %69 = vector.load %arg9[%c32, %c0_42] : memref<36x400xf32, #tpu.memory_space<vmem>>, vector<4x400xf32>
    tpu.vector_store %arg9[%c32, %c0_42], %68 {strides = array<i32>} : memref<36x400xf32, #tpu.memory_space<vmem>>, vector<4x400xf32>,
    %c0_43 = arith.constant 0 : index
    %c0_44 = arith.constant 0 : index
    %70 = vector.load %arg2[%c0_43, %c0_44] : memref<8x36xf32, #tpu.memory_space<vmem>>, vector<8x36xf32>
    %c0_45 = arith.constant 0 : index
    %c0_46 = arith.constant 0 : index
    %71 = vector.load %arg9[%c0_45, %c0_46] : memref<36x400xf32, #tpu.memory_space<vmem>>, vector<36x400xf32>
    %cst_47 = arith.constant dense<0.000000e+00> : vector<8x400xf32>
    %72 = tpu.matmul %70, %71, %cst_47 {dimension_numbers = #tpu.dot_dimension_numbers<[1], [0], [0], [1], [0, 0, 1, 1], [], []>} : vector<8x36xf32>, vector<36x400xf32>, vector<8x400xf32> -> vector<8x400xf32>
    %c0_48 = arith.constant 0 : index
    %c0_49 = arith.constant 0 : index
    %73 = vector.load %arg3[%c0_48, %c0_49] : memref<8x1xf32, #tpu.memory_space<vmem>>, vector<8x1xf32>
    %74 = vector.broadcast %73 : vector<8x1xf32> to vector<8x400xf32>
    %75 = arith.addf %72, %74 : vector<8x400xf32>
    %cst_50 = arith.constant 0.000000e+00 : f32
    %cst_51 = arith.constant 6.000000e+00 : f32
    %76 = vector.broadcast %cst_50 : f32 to vector<8x400xf32>
    %77 = arith.maximumf %76, %75 : vector<8x400xf32>
    %78 = vector.broadcast %cst_51 : f32 to vector<8x400xf32>
    %79 = arith.minimumf %78, %77 : vector<8x400xf32>
    %c0_52 = arith.constant 0 : index
    %c0_53 = arith.constant 0 : index
    %80 = vector.load %arg4[%c0_52, %c0_53] : memref<1x400xf32, #tpu.memory_space<vmem>>, vector<1x400xf32>
    %81 = vector.broadcast %80 : vector<1x400xf32> to vector<8x400xf32>
    %82 = arith.mulf %79, %81 : vector<8x400xf32>
    %c0_54 = arith.constant 0 : index
    %c0_55 = arith.constant 0 : index
    %83 = vector.load %arg10[%c0_54, %c0_55] : memref<8x442xf32, #tpu.memory_space<vmem>>, vector<8x400xf32>
    tpu.vector_store %arg10[%c0_54, %c0_55], %82 {strides = array<i32>} : memref<8x442xf32, #tpu.memory_space<vmem>>, vector<8x400xf32>,
    %cst_56 = arith.constant 0.000000e+00 : f32
    %84 = vector.broadcast %cst_56 : f32 to vector<8x42xf32>
    %c0_57 = arith.constant 0 : index
    %c400 = arith.constant 400 : index
    %85 = vector.load %arg10[%c0_57, %c400] : memref<8x442xf32, #tpu.memory_space<vmem>>, vector<8x42xf32>
    tpu.vector_store %arg10[%c0_57, %c400], %84 {strides = array<i32>} : memref<8x442xf32, #tpu.memory_space<vmem>>, vector<8x42xf32>,
    %cst_58 = arith.constant 0.000000e+00 : f32
    %86 = vector.broadcast %cst_58 : f32 to vector<8x400xf32>
    %c0_59 = arith.constant 0 : index
    %c0_60 = arith.constant 0 : index
    %87 = vector.load %arg5[%c0_59, %c0_60] : memref<8x9xf32, #tpu.memory_space<vmem>>, vector<8x1xf32>
    %c0_61 = arith.constant 0 : index
    %c0_62 = arith.constant 0 : index
    %88 = vector.load %arg10[%c0_61, %c0_62] : memref<8x442xf32, #tpu.memory_space<vmem>>, vector<8x400xf32>
    %89 = vector.broadcast %87 : vector<8x1xf32> to vector<8x400xf32>
    %90 = arith.mulf %89, %88 : vector<8x400xf32>
    %91 = arith.addf %86, %90 : vector<8x400xf32>
    %c0_63 = arith.constant 0 : index
    %c1 = arith.constant 1 : index
    %92 = vector.load %arg5[%c0_63, %c1] : memref<8x9xf32, #tpu.memory_space<vmem>>, vector<8x1xf32>
    %c0_64 = arith.constant 0 : index
    %c1_65 = arith.constant 1 : index
    %93 = vector.load %arg10[%c0_64, %c1_65] : memref<8x442xf32, #tpu.memory_space<vmem>>, vector<8x400xf32>
    %94 = vector.broadcast %92 : vector<8x1xf32> to vector<8x400xf32>
    %95 = arith.mulf %94, %93 : vector<8x400xf32>
    %96 = arith.addf %91, %95 : vector<8x400xf32>
    %c0_66 = arith.constant 0 : index
    %c2_67 = arith.constant 2 : index
    %97 = vector.load %arg5[%c0_66, %c2_67] : memref<8x9xf32, #tpu.memory_space<vmem>>, vector<8x1xf32>
    %c0_68 = arith.constant 0 : index
    %c2_69 = arith.constant 2 : index
    %98 = vector.load %arg10[%c0_68, %c2_69] : memref<8x442xf32, #tpu.memory_space<vmem>>, vector<8x400xf32>
    %99 = vector.broadcast %97 : vector<8x1xf32> to vector<8x400xf32>
    %100 = arith.mulf %99, %98 : vector<8x400xf32>
    %101 = arith.addf %96, %100 : vector<8x400xf32>
    %c0_70 = arith.constant 0 : index
    %c3 = arith.constant 3 : index
    %102 = vector.load %arg5[%c0_70, %c3] : memref<8x9xf32, #tpu.memory_space<vmem>>, vector<8x1xf32>
    %c0_71 = arith.constant 0 : index
    %c20_72 = arith.constant 20 : index
    %103 = vector.load %arg10[%c0_71, %c20_72] : memref<8x442xf32, #tpu.memory_space<vmem>>, vector<8x400xf32>
    %104 = vector.broadcast %102 : vector<8x1xf32> to vector<8x400xf32>
    %105 = arith.mulf %104, %103 : vector<8x400xf32>
    %106 = arith.addf %101, %105 : vector<8x400xf32>
    %c0_73 = arith.constant 0 : index
    %c4_74 = arith.constant 4 : index
    %107 = vector.load %arg5[%c0_73, %c4_74] : memref<8x9xf32, #tpu.memory_space<vmem>>, vector<8x1xf32>
    %c0_75 = arith.constant 0 : index
    %c21 = arith.constant 21 : index
    %108 = vector.load %arg10[%c0_75, %c21] : memref<8x442xf32, #tpu.memory_space<vmem>>, vector<8x400xf32>
    %109 = vector.broadcast %107 : vector<8x1xf32> to vector<8x400xf32>
    %110 = arith.mulf %109, %108 : vector<8x400xf32>
    %111 = arith.addf %106, %110 : vector<8x400xf32>
    %c0_76 = arith.constant 0 : index
    %c5 = arith.constant 5 : index
    %112 = vector.load %arg5[%c0_76, %c5] : memref<8x9xf32, #tpu.memory_space<vmem>>, vector<8x1xf32>
    %c0_77 = arith.constant 0 : index
    %c22 = arith.constant 22 : index
    %113 = vector.load %arg10[%c0_77, %c22] : memref<8x442xf32, #tpu.memory_space<vmem>>, vector<8x400xf32>
    %114 = vector.broadcast %112 : vector<8x1xf32> to vector<8x400xf32>
    %115 = arith.mulf %114, %113 : vector<8x400xf32>
    %116 = arith.addf %111, %115 : vector<8x400xf32>
    %c0_78 = arith.constant 0 : index
    %c6 = arith.constant 6 : index
    %117 = vector.load %arg5[%c0_78, %c6] : memref<8x9xf32, #tpu.memory_space<vmem>>, vector<8x1xf32>
    %c0_79 = arith.constant 0 : index
    %c40_80 = arith.constant 40 : index
    %118 = vector.load %arg10[%c0_79, %c40_80] : memref<8x442xf32, #tpu.memory_space<vmem>>, vector<8x400xf32>
    %119 = vector.broadcast %117 : vector<8x1xf32> to vector<8x400xf32>
    %120 = arith.mulf %119, %118 : vector<8x400xf32>
    %121 = arith.addf %116, %120 : vector<8x400xf32>
    %c0_81 = arith.constant 0 : index
    %c7 = arith.constant 7 : index
    %122 = vector.load %arg5[%c0_81, %c7] : memref<8x9xf32, #tpu.memory_space<vmem>>, vector<8x1xf32>
    %c0_82 = arith.constant 0 : index
    %c41 = arith.constant 41 : index
    %123 = vector.load %arg10[%c0_82, %c41] : memref<8x442xf32, #tpu.memory_space<vmem>>, vector<8x400xf32>
    %124 = vector.broadcast %122 : vector<8x1xf32> to vector<8x400xf32>
    %125 = arith.mulf %124, %123 : vector<8x400xf32>
    %126 = arith.addf %121, %125 : vector<8x400xf32>
    %c0_83 = arith.constant 0 : index
    %c8_84 = arith.constant 8 : index
    %127 = vector.load %arg5[%c0_83, %c8_84] : memref<8x9xf32, #tpu.memory_space<vmem>>, vector<8x1xf32>
    %c0_85 = arith.constant 0 : index
    %c42_86 = arith.constant 42 : index
    %128 = vector.load %arg10[%c0_85, %c42_86] : memref<8x442xf32, #tpu.memory_space<vmem>>, vector<8x400xf32>
    %129 = vector.broadcast %127 : vector<8x1xf32> to vector<8x400xf32>
    %130 = arith.mulf %129, %128 : vector<8x400xf32>
    %131 = arith.addf %126, %130 : vector<8x400xf32>
    %c0_87 = arith.constant 0 : index
    %c0_88 = arith.constant 0 : index
    %132 = vector.load %arg6[%c0_87, %c0_88] : memref<8x1xf32, #tpu.memory_space<vmem>>, vector<8x1xf32>
    %133 = vector.broadcast %132 : vector<8x1xf32> to vector<8x400xf32>
    %134 = arith.addf %131, %133 : vector<8x400xf32>
    %cst_89 = arith.constant 0.000000e+00 : f32
    %cst_90 = arith.constant 6.000000e+00 : f32
    %135 = vector.broadcast %cst_89 : f32 to vector<8x400xf32>
    %136 = arith.maximumf %135, %134 : vector<8x400xf32>
    %137 = vector.broadcast %cst_90 : f32 to vector<8x400xf32>
    %138 = arith.minimumf %137, %136 : vector<8x400xf32>
    %139 = vector.extract_strided_slice %138 {offsets = [0, 0], sizes = [8, 360], strides = [1, 1]} : vector<8x400xf32> to vector<8x360xf32>
    %c0_91 = arith.constant 0 : index
    %c0_92 = arith.constant 0 : index
    %c0_93 = arith.constant 0 : index
    %140 = vector.load %arg7[%c0_91, %c0_92, %c0_93] : memref<1x8x360xf32, #tpu.memory_space<vmem>>, vector<1x8x360xf32>
    %141 = vector.shape_cast %140 : vector<1x8x360xf32> to vector<8x360xf32>
    %142 = vector.shape_cast %139 : vector<8x360xf32> to vector<1x8x360xf32>
    tpu.vector_store %arg7[%c0_91, %c0_92, %c0_93], %142 {strides = array<i32>} : memref<1x8x360xf32, #tpu.memory_space<vmem>>, vector<1x8x360xf32>,
    return
  }
  func.func @transform_0(%arg0: i32) -> (i32, i32, i32, i32) {
    %c0_i32 = arith.constant 0 : i32
    %c0_i32_0 = arith.constant 0 : i32
    %c0_i32_1 = arith.constant 0 : i32
    %c0_i32_2 = arith.constant 0 : i32
    return %arg0, %c0_i32, %c0_i32_0, %c0_i32_1 : i32, i32, i32, i32
  }
  func.func @transform_1(%arg0: i32) -> (i32, i32) {
    %c0_i32 = arith.constant 0 : i32
    %c0_i32_0 = arith.constant 0 : i32
    %c0_i32_1 = arith.constant 0 : i32
    return %c0_i32, %c0_i32_0 : i32, i32
  }
  func.func @transform_2(%arg0: i32) -> (i32, i32) {
    %c0_i32 = arith.constant 0 : i32
    %c0_i32_0 = arith.constant 0 : i32
    %c0_i32_1 = arith.constant 0 : i32
    return %c0_i32, %c0_i32_0 : i32, i32
  }
  func.func @transform_3(%arg0: i32) -> (i32, i32) {
    %c0_i32 = arith.constant 0 : i32
    %c0_i32_0 = arith.constant 0 : i32
    %c0_i32_1 = arith.constant 0 : i32
    return %c0_i32, %c0_i32_0 : i32, i32
  }
  func.func @transform_4(%arg0: i32) -> (i32, i32) {
    %c0_i32 = arith.constant 0 : i32
    %c0_i32_0 = arith.constant 0 : i32
    %c0_i32_1 = arith.constant 0 : i32
    return %c0_i32, %c0_i32_0 : i32, i32
  }
  func.func @transform_5(%arg0: i32) -> (i32, i32) {
    %c0_i32 = arith.constant 0 : i32
    %c0_i32_0 = arith.constant 0 : i32
    %c0_i32_1 = arith.constant 0 : i32
    return %c0_i32, %c0_i32_0 : i32, i32
  }
  func.func @transform_6(%arg0: i32) -> (i32, i32, i32) {
    %c0_i32 = arith.constant 0 : i32
    %c0_i32_0 = arith.constant 0 : i32
    %c0_i32_1 = arith.constant 0 : i32
    return %arg0, %c0_i32, %c0_i32_0 : i32, i32, i32
  }
}

</mosaic_0001>

<llo_original>
// kernel: tpu_custom_call.1
$region0: #{tpu_custom_call.1}
  #allocation0 [shape = 'u32[]', space=smem, size = 0x4, offset = 0x4, fixed_abs, tag = 'smem constant byte address 0x4 - core index']
  #allocation1 [shape = 'u32[144,128]{1,0:T(1,128)}', space=vmem, size = 0x12000, scoped, tag = 'internal scratch']
  #allocation2 [shape = 'f32[4,484]{1,0:T(4,128)}', space=vmem, size = 0x2000, scoped, tag = 'scratch operand']
  #allocation3 [shape = 'f32[36,400]{1,0:T(8,128)}', space=vmem, size = 0x14000, scoped, tag = 'scratch operand']
  #allocation4 [shape = 'f32[8,442]{1,0:T(8,128)}', space=vmem, size = 0x4000, scoped, tag = 'scratch operand']
  %s0 = inlined_call_operand.hbm [shape: f32[2,4,16,16], index: 0, kind: input, shape index: {}]
  %s1 = inlined_call_operand.vmem [shape: f32[8,36], index: 1, kind: input, shape index: {}]
  %s2 = inlined_call_operand.vmem [shape: f32[8,1], index: 2, kind: input, shape index: {}]
  %s3 = inlined_call_operand.vmem [shape: f32[1,400], index: 3, kind: input, shape index: {}]
  %s4 = inlined_call_operand.vmem [shape: f32[8,9], index: 4, kind: input, shape index: {}]
  %s5 = inlined_call_operand.vmem [shape: f32[8,1], index: 5, kind: input, shape index: {}]
  %s6 = inlined_call_operand.hbm [shape: f32[2,8,360], index: 6, kind: output, shape index: {}]
  %s7 = sld [smem:[#allocation0]]
  $region61: #{tpu_custom_call.1} parent=0
    _
  %s9 = ssub.s32 1, %s7
  %s10 = scalar_select 0, %s9, %s7
  $region1: #{tpu_custom_call.1} parent=0
    #allocation5 [shape = 'u8[65536]{0}', space=vmem, size = 0x10000, scoped, tag = 'input window, operand 0']
    #allocation6 [shape = 's32[2]{0}', space=sflag, size = 0x8, scoped, tag = 'scoped memory for tpu_custom_call.1']
    #allocation7 [shape = 's32[2]{0}', space=sflag, size = 0x8, scoped, tag = 'scoped memory for tpu_custom_call.1']
    #allocation8 [shape = 'u8[24576]{0}', space=vmem, size = 0x6000, scoped, tag = 'output window, operand 0']
    %11 = vsyncpa [#allocation6], 0
    %s12 = scalar_lea.sflag [#allocation6], 1
    %13 = vsyncpa %s12, 0
    %14 = vsyncpa [#allocation7], 0
    %s15 = scalar_lea.sflag [#allocation7], 1
    %16 = vsyncpa %s15, 0
    loop: start=0, step=1, limit=4
    $region2: #{tpu_custom_call.1} parent=1 // loop_pre_header
      _
    $region3: #{tpu_custom_call.1} parent=1 // loop_header
      %s18 = sphi 0, %s22
      %p19 = scmp.ge.s32.totalorder %s18, 4
      %s28 = sphi 0, %s30
      %s31 = sphi 0, %s28
      %s32 = sphi 0, %s31
      %s48 = sphi 0, %s32
      %s52 = sphi 0, %s52
      %s54 = sphi 0, %s52
      %s55 = sphi 0, %s54
      %s69 = sphi 0, %s55
      %s73 = sphi 0, %s73
      %s75 = sphi 0, %s73
      %s76 = sphi 0, %s75
      %s90 = sphi 0, %s76
      %s94 = sphi 0, %s94
      %s96 = sphi 0, %s94
      %s97 = sphi 0, %s96
      %s111 = sphi 0, %s97
      %s115 = sphi 0, %s115
      %s117 = sphi 0, %s115
      %s118 = sphi 0, %s117
      %s132 = sphi 0, %s118
      %s136 = sphi 0, %s136
      %s138 = sphi 0, %s136
      %s139 = sphi 0, %s138
      %s153 = sphi 0, %s139
      %s159 = sphi 0, %s161
      %s162 = sphi 0, %s159
      %s163 = sphi 0, %s162
      %s179 = sphi 0, %s163
    $region4: #{tpu_custom_call.1} parent=1 // loop_header_branch
      %21 = sbr.rel (%p19) target = $region8
    $region5: #{tpu_custom_call.1} parent=1 // loop_body
      %s23 = ssub.s32 %s18, 1
      %s24 = ssub.s32 %s18, 2
      %s25 = sadd.s32 %s18, 1
      %s26 = ssub.s32 %s18, %s25
      %p27 = scmp.eq.s32.totalorder %s26, 0
      %s29 = sadd.s32 %s28, 1
      %s30 = scalar_select %p27, %s28, %s29
      %p33 = pneg %p27
      %p34 = scmp.eq.s32.totalorder %s18, 1
      %p35 = por %p33, %p34
      %p36 = scmp.ne.s32.totalorder %s28, %s31
      %p37 = scmp.eq.s32.totalorder %s18, 0
      %p38 = por %p36, %p37
      %p39 = scmp.ne.s32.totalorder %s28, %s31
      %p40 = scmp.eq.s32.totalorder %s23, 1
      %p41 = por %p39, %p40
      %p42 = scmp.ne.s32.totalorder %s31, %s32
      %p43 = scmp.eq.s32.totalorder %s23, 0
      %p44 = por %p42, %p43
      %p45 = scmp.ne.s32.totalorder %s31, %s32
      %p46 = scmp.eq.s32.totalorder %s24, 1
      %p47 = por %p45, %p46
      %p49 = scmp.ne.s32.totalorder %s32, %s48
      %p50 = scmp.eq.s32.totalorder %s24, 0
      %p51 = por %p49, %p50
      %s53 = sadd.s32 %s52, 1
      %p56 = scmp.eq.s32.totalorder %s18, 1
      %p57 = scmp.ne.s32.totalorder %s52, %s54
      %p58 = scmp.eq.s32.totalorder %s18, 0
      %p59 = por %p57, %p58
      %p60 = scmp.ne.s32.totalorder %s52, %s54
      %p61 = scmp.eq.s32.totalorder %s23, 1
      %p62 = por %p60, %p61
      %p63 = scmp.ne.s32.totalorder %s54, %s55
      %p64 = scmp.eq.s32.totalorder %s23, 0
      %p65 = por %p63, %p64
      %p66 = scmp.ne.s32.totalorder %s54, %s55
      %p67 = scmp.eq.s32.totalorder %s24, 1
      %p68 = por %p66, %p67
      %p70 = scmp.ne.s32.totalorder %s55, %s69
      %p71 = scmp.eq.s32.totalorder %s24, 0
      %p72 = por %p70, %p71
      %s74 = sadd.s32 %s73, 1
      %p77 = scmp.eq.s32.totalorder %s18, 1
      %p78 = scmp.ne.s32.totalorder %s73, %s75
      %p79 = scmp.eq.s32.totalorder %s18, 0
      %p80 = por %p78, %p79
      %p81 = scmp.ne.s32.totalorder %s73, %s75
      %p82 = scmp.eq.s32.totalorder %s23, 1
      %p83 = por %p81, %p82
      %p84 = scmp.ne.s32.totalorder %s75, %s76
      %p85 = scmp.eq.s32.totalorder %s23, 0
      %p86 = por %p84, %p85
      %p87 = scmp.ne.s32.totalorder %s75, %s76
      %p88 = scmp.eq.s32.totalorder %s24, 1
      %p89 = por %p87, %p88
      %p91 = scmp.ne.s32.totalorder %s76, %s90
      %p92 = scmp.eq.s32.totalorder %s24, 0
      %p93 = por %p91, %p92
      %s95 = sadd.s32 %s94, 1
      %p98 = scmp.eq.s32.totalorder %s18, 1
      %p99 = scmp.ne.s32.totalorder %s94, %s96
      %p100 = scmp.eq.s32.totalorder %s18, 0
      %p101 = por %p99, %p100
      %p102 = scmp.ne.s32.totalorder %s94, %s96
      %p103 = scmp.eq.s32.totalorder %s23, 1
      %p104 = por %p102, %p103
      %p105 = scmp.ne.s32.totalorder %s96, %s97
      %p106 = scmp.eq.s32.totalorder %s23, 0
      %p107 = por %p105, %p106
      %p108 = scmp.ne.s32.totalorder %s96, %s97
      %p109 = scmp.eq.s32.totalorder %s24, 1
      %p110 = por %p108, %p109
      %p112 = scmp.ne.s32.totalorder %s97, %s111
      %p113 = scmp.eq.s32.totalorder %s24, 0
      %p114 = por %p112, %p113
      %s116 = sadd.s32 %s115, 1
      %p119 = scmp.eq.s32.totalorder %s18, 1
      %p120 = scmp.ne.s32.totalorder %s115, %s117
      %p121 = scmp.eq.s32.totalorder %s18, 0
      %p122 = por %p120, %p121
      %p123 = scmp.ne.s32.totalorder %s115, %s117
      %p124 = scmp.eq.s32.totalorder %s23, 1
      %p125 = por %p123, %p124
      %p126 = scmp.ne.s32.totalorder %s117, %s118
      %p127 = scmp.eq.s32.totalorder %s23, 0
      %p128 = por %p126, %p127
      %p129 = scmp.ne.s32.totalorder %s117, %s118
      %p130 = scmp.eq.s32.totalorder %s24, 1
      %p131 = por %p129, %p130
      %p133 = scmp.ne.s32.totalorder %s118, %s132
      %p134 = scmp.eq.s32.totalorder %s24, 0
      %p135 = por %p133, %p134
      %s137 = sadd.s32 %s136, 1
      %p140 = scmp.eq.s32.totalorder %s18, 1
      %p141 = scmp.ne.s32.totalorder %s136, %s138
      %p142 = scmp.eq.s32.totalorder %s18, 0
      %p143 = por %p141, %p142
      %p144 = scmp.ne.s32.totalorder %s136, %s138
      %p145 = scmp.eq.s32.totalorder %s23, 1
      %p146 = por %p144, %p145
      %p147 = scmp.ne.s32.totalorder %s138, %s139
      %p148 = scmp.eq.s32.totalorder %s23, 0
      %p149 = por %p147, %p148
      %p150 = scmp.ne.s32.totalorder %s138, %s139
      %p151 = scmp.eq.s32.totalorder %s24, 1
      %p152 = por %p150, %p151
      %p154 = scmp.ne.s32.totalorder %s139, %s153
      %p155 = scmp.eq.s32.totalorder %s24, 0
      %p156 = por %p154, %p155
      %s157 = ssub.s32 %s18, %s25
      %p158 = scmp.eq.s32.totalorder %s157, 0
      %s160 = sadd.s32 %s159, 1
      %s161 = scalar_select %p158, %s159, %s160
      %p164 = pneg %p158
      %p165 = scmp.eq.s32.totalorder %s18, 1
      %p166 = por %p164, %p165
      %p167 = scmp.ne.s32.totalorder %s159, %s162
      %p168 = scmp.eq.s32.totalorder %s18, 0
      %p169 = por %p167, %p168
      %p170 = scmp.ne.s32.totalorder %s159, %s162
      %p171 = scmp.eq.s32.totalorder %s23, 1
      %p172 = por %p170, %p171
      %p173 = scmp.ne.s32.totalorder %s162, %s163
      %p174 = scmp.eq.s32.totalorder %s23, 0
      %p175 = por %p173, %p174
      %p176 = scmp.ne.s32.totalorder %s162, %s163
      %p177 = scmp.eq.s32.totalorder %s24, 1
      %p178 = por %p176, %p177
      %p180 = scmp.ne.s32.totalorder %s163, %s179
      %p181 = scmp.eq.s32.totalorder %s24, 0
      %p182 = por %p180, %p181
      %p183 = scmp.le.s32.totalorder 1, %s18
      %p184 = scmp.lt.s32.totalorder %s18, 3
      %p185 = pnand %p183, %p184
      %p186 = pneg %p185
      // Predicated region
      $region9: #{tpu_custom_call.1} parent=5 // pred_check
        _
      $region10: #{tpu_custom_call.1} parent=5 // pred_check_branch
        %188 = sbr.rel (%p185) target = $region12
      $region11: #{tpu_custom_call.1} parent=5 // pred_region
        %s189 = ssub.s32 %s18, 1
        // Predicated region
        $region13: #{tpu_custom_call.1} parent=11 // pred_check
          %p190 = pneg %p65
        $region14: #{tpu_custom_call.1} parent=11 // pred_check_branch
          %192 = sbr.rel (%p190) target = $region16
        $region15: #{tpu_custom_call.1} parent=11 // pred_region
          _
        $region16: #{tpu_custom_call.1} parent=11 // pred_fallthru
          _
        // Predicated region
        $region17: #{tpu_custom_call.1} parent=11 // pred_check
          %p193 = pneg %p86
        $region18: #{tpu_custom_call.1} parent=11 // pred_check_branch
          %195 = sbr.rel (%p193) target = $region20
        $region19: #{tpu_custom_call.1} parent=11 // pred_region
          _
        $region20: #{tpu_custom_call.1} parent=11 // pred_fallthru
          _
        // Predicated region
        $region21: #{tpu_custom_call.1} parent=11 // pred_check
          %p196 = pneg %p107
        $region22: #{tpu_custom_call.1} parent=11 // pred_check_branch
          %198 = sbr.rel (%p196) target = $region24
        $region23: #{tpu_custom_call.1} parent=11 // pred_region
          _
        $region24: #{tpu_custom_call.1} parent=11 // pred_fallthru
          _
        // Predicated region
        $region25: #{tpu_custom_call.1} parent=11 // pred_check
          %p199 = pneg %p128
        $region26: #{tpu_custom_call.1} parent=11 // pred_check_branch
          %201 = sbr.rel (%p199) target = $region28
        $region27: #{tpu_custom_call.1} parent=11 // pred_region
          _
        $region28: #{tpu_custom_call.1} parent=11 // pred_fallthru
          _
        // Predicated region
        $region29: #{tpu_custom_call.1} parent=11 // pred_check
          %p202 = pneg %p149
        $region30: #{tpu_custom_call.1} parent=11 // pred_check_branch
          %204 = sbr.rel (%p202) target = $region32
        $region31: #{tpu_custom_call.1} parent=11 // pred_region
          _
        $region32: #{tpu_custom_call.1} parent=11 // pred_fallthru
          _
      $region12: #{tpu_custom_call.1} parent=5 // pred_fallthru
        _
      %p205 = scmp.lt.s32.totalorder %s18, 2
      // Predicated region
      $region33: #{tpu_custom_call.1} parent=5 // pred_check
        %p206 = pneg %p205
      $region34: #{tpu_custom_call.1} parent=5 // pred_check_branch
        %208 = sbr.rel (%p206) target = $region36
      $region35: #{tpu_custom_call.1} parent=5 // pred_region
        // Predicated region
        $region37: #{tpu_custom_call.1} parent=35 // pred_check
          %p209 = pneg %p38
        $region38: #{tpu_custom_call.1} parent=35 // pred_check_branch
          %211 = sbr.rel (%p209) target = $region40
        $region39: #{tpu_custom_call.1} parent=35 // pred_region
          %s212 = sand.u32 %s28, 1
          %s213 = scalar_lea.sflag [#allocation6], %s212
          %s214 = sand.u32 %s28, 1
          %s215 = smul.addr %s214, 64
          %s216 = scalar_lea.vmem [#allocation5], %s215
          %s218 = ssub.s32 1024, 1024
          %219 = vsyncadd %s213, %s218
          %s220 = smul.addr %s18, 8
          %s221 = smul.addr %s220, 128
          %s222 = scalar_lea.hbm %s0, %s221
          %s223 = sshll.u32 %s216, 4
          %s224 = int_to_ptr.vmem [resolvable:$true] %s223
          %229 = dma.hbm_to_vmem [thread:$0]  %s222, 1024, %s224, %s213, 128, 128, 8
        $region40: #{tpu_custom_call.1} parent=35 // pred_fallthru
          _
      $region36: #{tpu_custom_call.1} parent=5 // pred_fallthru
        _
      %p230 = scmp.le.s32.totalorder 1, %s18
      %p231 = scmp.lt.s32.totalorder %s18, 3
      %p232 = pnand %p230, %p231
      %p233 = pneg %p232
      // Predicated region
      $region41: #{tpu_custom_call.1} parent=5 // pred_check
        _
      $region42: #{tpu_custom_call.1} parent=5 // pred_check_branch
        %235 = sbr.rel (%p232) target = $region44
      $region43: #{tpu_custom_call.1} parent=5 // pred_region
        %s236 = ssub.s32 %s18, 1
        %s237 = sand.u32 %s31, 1
        %s238 = scalar_lea.sflag [#allocation6], %s237
        %s239 = sand.u32 %s31, 1
        %s240 = smul.addr %s239, 64
        %s241 = scalar_lea.vmem [#allocation5], %s240
        // Predicated region
        $region45: #{tpu_custom_call.1} parent=43 // pred_check
          %p242 = pneg %p44
        $region46: #{tpu_custom_call.1} parent=43 // pred_check_branch
          %244 = sbr.rel (%p242) target = $region48
        $region47: #{tpu_custom_call.1} parent=43 // pred_region
          %245 = dma.done %s238, 1024
        $region48: #{tpu_custom_call.1} parent=43 // pred_fallthru
          _
        %s246 = sand.u32 %s31, 1
        %s247 = scalar_lea.sflag [#allocation6], %s246
        %s248 = sand.u32 %s31, 1
        %s249 = smul.addr %s248, 64
        %s250 = scalar_lea.vmem [#allocation5], %s249
        %p251 = pneg %p44
        %p252 = pneg %p41
        %p253 = pneg %p65
        %p254 = pneg %p62
        %p255 = pneg %p86
        %p256 = pneg %p83
        %p257 = pneg %p107
        %p258 = pneg %p104
        %p259 = pneg %p128
        %p260 = pneg %p125
        %p261 = pneg %p149
        %p262 = pneg %p146
        %p263 = pneg %p175
        %p264 = pneg %p172
        %s265 = sand.u32 %s162, 1
        %s266 = scalar_lea.sflag [#allocation7], %s265
        %s267 = sand.u32 %s162, 1
        %s268 = smul.addr %s267, 24
        %s269 = scalar_lea.vmem [#allocation8], %s268
        %270 = vst [vmem:[#allocation2] sm:$0xff] 0.0
        %vm271 = vcmask 1043456
        %vm272 = vcmask 818180
        %vm273 = vmor %vm272, %vm271
        %274 = vst.msk [vmem:[#allocation2 + $0x8] sm:$0xff] %vm273, 0.0
        %v275 = vld [vmem:[%s241] sm:$0xff]
        %v276 = vld [vmem:[%s241 + $0x8] sm:$0xff]
        %v277 = vld [vmem:[%s241 + $0x10] sm:$0xff]
        %v278 = vld [vmem:[%s241 + $0x18] sm:$0xff]
        %v279 = vld [vmem:[%s241 + $0x20] sm:$0xff]
        %v280 = vld [vmem:[%s241 + $0x28] sm:$0xff]
        %v281 = vld [vmem:[%s241 + $0x30] sm:$0xff]
        %v282 = vld [vmem:[%s241 + $0x38] sm:$0xff]
        %v287 = vrot.slane %v277, 7
        %vm288 = vcmask 1041409
        %v289 = vsel %vm288, %v287, %v275
        %vm290 = vcmask 1045509
        %v291 = vsel %vm290, %v287, %v289
        %v292 = vrot.slane %v279, 6
        %vm293 = vcmask 1042434
        %v294 = vsel %vm293, %v292, %v291
        %vm295 = vcmask 1046534
        %v296 = vsel %vm295, %v292, %v294
        %v297 = vrot.slane %v281, 5
        %vm298 = vcmask 1043459
        %v299 = vsel %vm298, %v297, %v296
        %vm300 = vcmask 1047559
        %v301 = vsel %vm300, %v297, %v299
        %302 = vrot.lane.b32.xlu0 %v301, 84
        %v303 = vpop.permute.xlu0 %302
        %vm305 = vcmask 814752
        %306 = vst.msk [vmem:[#allocation2] sm:$0xf] %vm305, %v303
        %v307 = vrot.slane %v275, 1
        %v308 = vsel %vm288, %v277, %v307
        %v309 = vsel %vm290, %v277, %v308
        %v310 = vrot.slane %v279, 7
        %v311 = vsel %vm293, %v310, %v309
        %v312 = vsel %vm295, %v310, %v311
        %v313 = vrot.slane %v281, 6
        %v314 = vsel %vm298, %v313, %v312
        %v315 = vsel %vm300, %v313, %v314
        %316 = vrot.lane.b32.xlu0 %v315, 104
        %v317 = vpop.permute.xlu0 %316
        %vm319 = vcmask 978752
        %320 = vst.msk [vmem:[#allocation2] sm:$0xf] %vm319, %v317
        %v321 = vrot.slane %v275, 2
        %v322 = vrot.slane %v277, 1
        %v323 = vsel %vm288, %v322, %v321
        %v324 = vsel %vm290, %v322, %v323
        %v325 = vsel %vm293, %v279, %v324
        %v326 = vsel %vm295, %v279, %v325
        %v327 = vrot.slane %v281, 7
        %v328 = vsel %vm298, %v327, %v326
        %v329 = vsel %vm300, %v327, %v328
        %330 = vrot.lane.b32.xlu0 %v329, 124
        %v331 = vpop.permute.xlu0 %330
        %v332 = vrot.slane %v331, 4
        %vm333 = vcmask 1014784
        %v334 = vsel %vm333, %v332, %v331
        %vm336 = vcmask 1044448
        %vm337 = vcmask 97284
        %vm338 = vmor %vm337, %vm336
        %339 = vst.msk [vmem:[#allocation2] sm:$0xff] %vm338, %v334
        %v340 = vrot.slane %v275, 3
        %v341 = vrot.slane %v277, 2
        %v342 = vsel %vm288, %v341, %v340
        %v343 = vsel %vm290, %v341, %v342
        %v344 = vrot.slane %v279, 1
        %v345 = vsel %vm293, %v344, %v343
        %v346 = vsel %vm295, %v344, %v345
        %v347 = vsel %vm298, %v281, %v346
        %v348 = vsel %vm300, %v281, %v347
        %349 = vrot.lane.b32.xlu0 %v348, 16
        %v350 = vpop.permute.xlu0 %349
        %vm352 = vcmask 257152
        %353 = vst.msk [vmem:[#allocation2 + $0x4] sm:$0xf] %vm352, %v350
        %v354 = vcombine.high %v275, %v275
        %v355 = vcombine.high %v277, %v277
        %v356 = vcombine.high %v279, %v279
        %v357 = vcombine.high %v281, %v281
        %v358 = vrot.slane %v355, 7
        %v359 = vsel %vm288, %v358, %v354
        %v360 = vsel %vm290, %v358, %v359
        %v361 = vrot.slane %v356, 6
        %v362 = vsel %vm293, %v361, %v360
        %v363 = vsel %vm295, %v361, %v362
        %v364 = vrot.slane %v357, 5
        %v365 = vsel %vm298, %v364, %v363
        %v366 = vsel %vm300, %v364, %v365
        %367 = vrot.lane.b32.xlu0 %v366, 36
        %v368 = vpop.permute.xlu0 %367
        %vm370 = vcmask 421152
        %371 = vst.msk [vmem:[#allocation2 + $0x4] sm:$0xf] %vm370, %v368
        %v372 = vrot.slane %v354, 1
        %v373 = vsel %vm288, %v355, %v372
        %v374 = vsel %vm290, %v355, %v373
        %v375 = vrot.slane %v356, 7
        %v376 = vsel %vm293, %v375, %v374
        %v377 = vsel %vm295, %v375, %v376
        %v378 = vrot.slane %v357, 6
        %v379 = vsel %vm298, %v378, %v377
        %v380 = vsel %vm300, %v378, %v379
        %381 = vrot.lane.b32.xlu0 %v380, 56
        %v382 = vpop.permute.xlu0 %381
        %vm384 = vcmask 585152
        %385 = vst.msk [vmem:[#allocation2 + $0x4] sm:$0xf] %vm384, %v382
        %v386 = vrot.slane %v354, 2
        %v387 = vrot.slane %v355, 1
        %v388 = vsel %vm288, %v387, %v386
        %v389 = vsel %vm290, %v387, %v388
        %v390 = vsel %vm293, %v356, %v389
        %v391 = vsel %vm295, %v356, %v390
        %v392 = vrot.slane %v357, 7
        %v393 = vsel %vm298, %v392, %v391
        %v394 = vsel %vm300, %v392, %v393
        %395 = vrot.lane.b32.xlu0 %v394, 76
        %v396 = vpop.permute.xlu0 %395
        %vm398 = vcmask 749152
        %399 = vst.msk [vmem:[#allocation2 + $0x4] sm:$0xf] %vm398, %v396
        %v400 = vrot.slane %v354, 3
        %v401 = vrot.slane %v355, 2
        %v402 = vsel %vm288, %v401, %v400
        %v403 = vsel %vm290, %v401, %v402
        %v404 = vrot.slane %v356, 1
        %v405 = vsel %vm293, %v404, %v403
        %v406 = vsel %vm295, %v404, %v405
        %v407 = vsel %vm298, %v357, %v406
        %v408 = vsel %vm300, %v357, %v407
        %409 = vrot.lane.b32.xlu0 %v408, 96
        %v410 = vpop.permute.xlu0 %409
        %vm412 = vcmask 913152
        %413 = vst.msk [vmem:[#allocation2 + $0x4] sm:$0xf] %vm412, %v410
        %v418 = vrot.slane %v278, 7
        %v419 = vsel %vm288, %v418, %v276
        %v420 = vsel %vm290, %v418, %v419
        %v421 = vrot.slane %v280, 6
        %v422 = vsel %vm293, %v421, %v420
        %v423 = vsel %vm295, %v421, %v422
        %v424 = vrot.slane %v282, 5
        %v425 = vsel %vm298, %v424, %v423
        %v426 = vsel %vm300, %v424, %v425
        %427 = vrot.lane.b32.xlu0 %v426, 116
        %v428 = vpop.permute.xlu0 %427
        %v429 = vrot.slane %v428, 4
        %vm430 = vcmask 949248
        %v431 = vsel %vm430, %v429, %v428
        %vm433 = vcmask 1044384
        %vm434 = vcmask 31748
        %vm435 = vmor %vm434, %vm433
        %436 = vst.msk [vmem:[#allocation2 + $0x4] sm:$0xff] %vm435, %v431
        %v437 = vrot.slane %v276, 1
        %v438 = vsel %vm288, %v278, %v437
        %v439 = vsel %vm290, %v278, %v438
        %v440 = vrot.slane %v280, 7
        %v441 = vsel %vm293, %v440, %v439
        %v442 = vsel %vm295, %v440, %v441
        %v443 = vrot.slane %v282, 6
        %v444 = vsel %vm298, %v443, %v442
        %v445 = vsel %vm300, %v443, %v444
        %446 = vrot.lane.b32.xlu0 %v445, 8
        %v447 = vpop.permute.xlu0 %446
        %vm449 = vcmask 191552
        %450 = vst.msk [vmem:[#allocation2 + $0x8] sm:$0xf] %vm449, %v447
        %v451 = vrot.slane %v276, 2
        %v452 = vrot.slane %v278, 1
        %v453 = vsel %vm288, %v452, %v451
        %v454 = vsel %vm290, %v452, %v453
        %v455 = vsel %vm293, %v280, %v454
        %v456 = vsel %vm295, %v280, %v455
        %v457 = vrot.slane %v282, 7
        %v458 = vsel %vm298, %v457, %v456
        %v459 = vsel %vm300, %v457, %v458
        %460 = vrot.lane.b32.xlu0 %v459, 28
        %v461 = vpop.permute.xlu0 %460
        %vm463 = vcmask 355552
        %464 = vst.msk [vmem:[#allocation2 + $0x8] sm:$0xf] %vm463, %v461
        %v465 = vrot.slane %v276, 3
        %v466 = vrot.slane %v278, 2
        %v467 = vsel %vm288, %v466, %v465
        %v468 = vsel %vm290, %v466, %v467
        %v469 = vrot.slane %v280, 1
        %v470 = vsel %vm293, %v469, %v468
        %v471 = vsel %vm295, %v469, %v470
        %v472 = vsel %vm298, %v282, %v471
        %v473 = vsel %vm300, %v282, %v472
        %474 = vrot.lane.b32.xlu0 %v473, 48
        %v475 = vpop.permute.xlu0 %474
        %vm477 = vcmask 519552
        %478 = vst.msk [vmem:[#allocation2 + $0x8] sm:$0xf] %vm477, %v475
        %v479 = vcombine.high %v276, %v276
        %v480 = vcombine.high %v278, %v278
        %v481 = vcombine.high %v280, %v280
        %v482 = vcombine.high %v282, %v282
        %v483 = vrot.slane %v480, 7
        %v484 = vsel %vm288, %v483, %v479
        %v485 = vsel %vm290, %v483, %v484
        %v486 = vrot.slane %v481, 6
        %v487 = vsel %vm293, %v486, %v485
        %v488 = vsel %vm295, %v486, %v487
        %v489 = vrot.slane %v482, 5
        %v490 = vsel %vm298, %v489, %v488
        %v491 = vsel %vm300, %v489, %v490
        %492 = vrot.lane.b32.xlu0 %v491, 68
        %v493 = vpop.permute.xlu0 %492
        %vm495 = vcmask 683552
        %496 = vst.msk [vmem:[#allocation2 + $0x8] sm:$0xf] %vm495, %v493
        %v497 = vrot.slane %v479, 1
        %v498 = vsel %vm288, %v480, %v497
        %v499 = vsel %vm290, %v480, %v498
        %v500 = vrot.slane %v481, 7
        %v501 = vsel %vm293, %v500, %v499
        %v502 = vsel %vm295, %v500, %v501
        %v503 = vrot.slane %v482, 6
        %v504 = vsel %vm298, %v503, %v502
        %v505 = vsel %vm300, %v503, %v504
        %506 = vrot.lane.b32.xlu0 %v505, 88
        %v507 = vpop.permute.xlu0 %506
        %vm509 = vcmask 847552
        %510 = vst.msk [vmem:[#allocation2 + $0x8] sm:$0xf] %vm509, %v507
        %v511 = vrot.slane %v479, 2
        %v512 = vrot.slane %v480, 1
        %v513 = vsel %vm288, %v512, %v511
        %v514 = vsel %vm290, %v512, %v513
        %v515 = vsel %vm293, %v481, %v514
        %v516 = vsel %vm295, %v481, %v515
        %v517 = vrot.slane %v482, 7
        %v518 = vsel %vm298, %v517, %v516
        %v519 = vsel %vm300, %v517, %v518
        %520 = vrot.lane.b32.xlu0 %v519, 108
        %v521 = vpop.permute.xlu0 %520
        %vm523 = vcmask 1011552
        %524 = vst.msk [vmem:[#allocation2 + $0x8] sm:$0xf] %vm523, %v521
        %v525 = vrot.slane %v479, 3
        %v526 = vrot.slane %v480, 2
        %v527 = vsel %vm288, %v526, %v525
        %v528 = vsel %vm290, %v526, %v527
        %v529 = vrot.slane %v481, 1
        %v530 = vsel %vm293, %v529, %v528
        %v531 = vsel %vm295, %v529, %v530
        %v532 = vsel %vm298, %v482, %v531
        %v533 = vsel %vm300, %v482, %v532
        %vm535 = vcmask 125952
        %536 = vst.msk [vmem:[#allocation2 + $0xc] sm:$0xf] %vm535, %v533
        %v537 = vld [vmem:[#allocation2] sm:$0xff]
        %v538 = vld [vmem:[#allocation2 + $0x8] sm:$0xff]
        %v541 = vcombine.high %v537, %v537
        %v542 = vcombine.high %v538, %v538
        %545 = vst [vmem:[#allocation3] sm:$0xf] %v537
        %546 = vst [vmem:[#allocation3 + $0x8] sm:$0xf] %v541
        %547 = vst [vmem:[#allocation3 + $0x10] sm:$0xf] %v538
        %548 = vst.msk [vmem:[#allocation3 + $0x18] sm:$0xf] %vm535, %v542
        %v549 = vld [vmem:[#allocation2] sm:$0xff]
        %v550 = vld [vmem:[#allocation2 + $0x8] sm:$0xff]
        %v553 = vcombine.low %v549, %v549
        %v554 = vcombine.low %v550, %v550
        %555 = vrot.lane.b32.xlu0 %v553, 126
        %v556 = vpop.permute.xlu0 %555
        %557 = vrot.lane.b32.xlu0 %v549, 126
        %v558 = vpop.permute.xlu0 %557
        %559 = vrot.lane.b32.xlu0 %v554, 126
        %v560 = vpop.permute.xlu0 %559
        %561 = vrot.lane.b32.xlu0 %v550, 126
        %v562 = vpop.permute.xlu0 %561
        %vm563 = vcmask 1031168
        %v564 = vsel %vm563, %v556, %v558
        %v565 = vsel %vm563, %v558, %v560
        %v566 = vsel %vm563, %v560, %v562
        %571 = vst [vmem:[#allocation3] sm:$0xf0] %v564
        %572 = vst [vmem:[#allocation3 + $0x8] sm:$0xf0] %v565
        %573 = vst [vmem:[#allocation3 + $0x10] sm:$0xf0] %v566
        %vm574 = vcmask 130052
        %575 = vst.msk [vmem:[#allocation3 + $0x18] sm:$0xf0] %vm574, %v562
        %v576 = vld [vmem:[#allocation2] sm:$0xff]
        %v577 = vld [vmem:[#allocation2 + $0x8] sm:$0xff]
        %v580 = vcombine.high %v576, %v576
        %v581 = vcombine.high %v577, %v577
        %582 = vrot.lane.b32.xlu0 %v576, 124
        %v583 = vpop.permute.xlu0 %582
        %584 = vrot.lane.b32.xlu0 %v580, 124
        %v585 = vpop.permute.xlu0 %584
        %586 = vrot.lane.b32.xlu0 %v577, 124
        %v587 = vpop.permute.xlu0 %586
        %588 = vrot.lane.b32.xlu0 %v581, 124
        %v589 = vpop.permute.xlu0 %588
        %v590 = vsel %vm333, %v583, %v585
        %v591 = vsel %vm333, %v585, %v587
        %v592 = vsel %vm333, %v587, %v589
        %597 = vst [vmem:[#allocation3 + $0x20] sm:$0xf] %v590
        %598 = vst [vmem:[#allocation3 + $0x28] sm:$0xf] %v591
        %599 = vst [vmem:[#allocation3 + $0x30] sm:$0xf] %v592
        %600 = vst.msk [vmem:[#allocation3 + $0x38] sm:$0xf] %vm535, %v589
        %v601 = vld [vmem:[#allocation2] sm:$0xff]
        %v602 = vld [vmem:[#allocation2 + $0x8] sm:$0xff]
        %v605 = vcombine.low %v601, %v601
        %v606 = vcombine.low %v602, %v602
        %607 = vrot.lane.b32.xlu0 %v605, 88
        %v608 = vpop.permute.xlu0 %607
        %609 = vrot.lane.b32.xlu0 %v601, 88
        %v610 = vpop.permute.xlu0 %609
        %611 = vrot.lane.b32.xlu0 %v606, 88
        %v612 = vpop.permute.xlu0 %611
        %613 = vrot.lane.b32.xlu0 %v602, 88
        %v614 = vpop.permute.xlu0 %613
        %vm615 = vcmask 719872
        %v616 = vsel %vm615, %v608, %v610
        %v617 = vsel %vm615, %v610, %v612
        %v618 = vsel %vm615, %v612, %v614
        %623 = vst [vmem:[#allocation3 + $0x20] sm:$0xf0] %v616
        %624 = vst [vmem:[#allocation3 + $0x28] sm:$0xf0] %v617
        %625 = vst [vmem:[#allocation3 + $0x30] sm:$0xf0] %v618
        %626 = vst.msk [vmem:[#allocation3 + $0x38] sm:$0xf0] %vm574, %v614
        %v627 = vld [vmem:[#allocation2] sm:$0xff]
        %v628 = vld [vmem:[#allocation2 + $0x8] sm:$0xff]
        %v631 = vcombine.high %v627, %v627
        %v632 = vcombine.high %v628, %v628
        %633 = vrot.lane.b32.xlu0 %v627, 86
        %v634 = vpop.permute.xlu0 %633
        %635 = vrot.lane.b32.xlu0 %v631, 86
        %v636 = vpop.permute.xlu0 %635
        %637 = vrot.lane.b32.xlu0 %v628, 86
        %v638 = vpop.permute.xlu0 %637
        %639 = vrot.lane.b32.xlu0 %v632, 86
        %v640 = vpop.permute.xlu0 %639
        %vm641 = vcmask 703488
        %v642 = vsel %vm641, %v634, %v636
        %v643 = vsel %vm641, %v636, %v638
        %v644 = vsel %vm641, %v638, %v640
        %649 = vst [vmem:[#allocation3 + $0x40] sm:$0xf] %v642
        %650 = vst [vmem:[#allocation3 + $0x48] sm:$0xf] %v643
        %651 = vst [vmem:[#allocation3 + $0x50] sm:$0xf] %v644
        %652 = vst.msk [vmem:[#allocation3 + $0x58] sm:$0xf] %vm535, %v640
        %v653 = vld [vmem:[#allocation2] sm:$0xff]
        %v654 = vld [vmem:[#allocation2 + $0x8] sm:$0xff]
        %v657 = vcombine.low %v653, %v653
        %v658 = vcombine.low %v654, %v654
        %659 = vrot.lane.b32.xlu0 %v657, 84
        %v660 = vpop.permute.xlu0 %659
        %661 = vrot.lane.b32.xlu0 %v653, 84
        %v662 = vpop.permute.xlu0 %661
        %663 = vrot.lane.b32.xlu0 %v658, 84
        %v664 = vpop.permute.xlu0 %663
        %665 = vrot.lane.b32.xlu0 %v654, 84
        %v666 = vpop.permute.xlu0 %665
        %vm667 = vcmask 687104
        %v668 = vsel %vm667, %v660, %v662
        %v669 = vsel %vm667, %v662, %v664
        %v670 = vsel %vm667, %v664, %v666
        %675 = vst [vmem:[#allocation3 + $0x40] sm:$0xf0] %v668
        %676 = vst [vmem:[#allocation3 + $0x48] sm:$0xf0] %v669
        %677 = vst [vmem:[#allocation3 + $0x50] sm:$0xf0] %v670
        %678 = vst.msk [vmem:[#allocation3 + $0x58] sm:$0xf0] %vm574, %v666
        %v679 = vld [vmem:[#allocation2] sm:$0xff]
        %v680 = vld [vmem:[#allocation2 + $0x8] sm:$0xff]
        %v683 = vcombine.high %v679, %v679
        %v684 = vcombine.high %v680, %v680
        %685 = vrot.lane.b32.xlu0 %v679, 48
        %v686 = vpop.permute.xlu0 %685
        %687 = vrot.lane.b32.xlu0 %v683, 48
        %v688 = vpop.permute.xlu0 %687
        %689 = vrot.lane.b32.xlu0 %v680, 48
        %v690 = vpop.permute.xlu0 %689
        %691 = vrot.lane.b32.xlu0 %v684, 48
        %v692 = vpop.permute.xlu0 %691
        %vm693 = vcmask 392192
        %v694 = vsel %vm693, %v686, %v688
        %v695 = vsel %vm693, %v688, %v690
        %v696 = vsel %vm693, %v690, %v692
        %701 = vst [vmem:[#allocation3 + $0x60] sm:$0xf] %v694
        %702 = vst [vmem:[#allocation3 + $0x68] sm:$0xf] %v695
        %703 = vst [vmem:[#allocation3 + $0x70] sm:$0xf] %v696
        %704 = vst.msk [vmem:[#allocation3 + $0x78] sm:$0xf] %vm535, %v692
        %v705 = vld [vmem:[#allocation2] sm:$0xff]
        %v706 = vld [vmem:[#allocation2 + $0x8] sm:$0xff]
        %v709 = vcombine.low %v705, %v705
        %v710 = vcombine.low %v706, %v706
        %711 = vrot.lane.b32.xlu0 %v709, 46
        %v712 = vpop.permute.xlu0 %711
        %713 = vrot.lane.b32.xlu0 %v705, 46
        %v714 = vpop.permute.xlu0 %713
        %715 = vrot.lane.b32.xlu0 %v710, 46
        %v716 = vpop.permute.xlu0 %715
        %717 = vrot.lane.b32.xlu0 %v706, 46
        %v718 = vpop.permute.xlu0 %717
        %vm719 = vcmask 375808
        %v720 = vsel %vm719, %v712, %v714
        %v721 = vsel %vm719, %v714, %v716
        %v722 = vsel %vm719, %v716, %v718
        %727 = vst [vmem:[#allocation3 + $0x60] sm:$0xf0] %v720
        %728 = vst [vmem:[#allocation3 + $0x68] sm:$0xf0] %v721
        %729 = vst [vmem:[#allocation3 + $0x70] sm:$0xf0] %v722
        %730 = vst.msk [vmem:[#allocation3 + $0x78] sm:$0xf0] %vm574, %v718
        %v731 = vld [vmem:[#allocation2] sm:$0xff]
        %v732 = vld [vmem:[#allocation2 + $0x8] sm:$0xff]
        %v735 = vcombine.high %v731, %v731
        %v736 = vcombine.high %v732, %v732
        %737 = vrot.lane.b32.xlu0 %v731, 44
        %v738 = vpop.permute.xlu0 %737
        %739 = vrot.lane.b32.xlu0 %v735, 44
        %v740 = vpop.permute.xlu0 %739
        %741 = vrot.lane.b32.xlu0 %v732, 44
        %v742 = vpop.permute.xlu0 %741
        %743 = vrot.lane.b32.xlu0 %v736, 44
        %v744 = vpop.permute.xlu0 %743
        %vm745 = vcmask 359424
        %v746 = vsel %vm745, %v738, %v740
        %v747 = vsel %vm745, %v740, %v742
        %v748 = vsel %vm745, %v742, %v744
        %753 = vst [vmem:[#allocation3 + $0x80] sm:$0xf] %v746
        %754 = vst [vmem:[#allocation3 + $0x88] sm:$0xf] %v747
        %755 = vst [vmem:[#allocation3 + $0x90] sm:$0xf] %v748
        %756 = vst.msk [vmem:[#allocation3 + $0x98] sm:$0xf] %vm535, %v744
        %v757 = vld [vmem:[%s1] sm:$0xff]
        %v758 = vld [vmem:[#allocation3] sm:$0xff]
        %v759 = vld [vmem:[#allocation3 + $0x8] sm:$0xff]
        %v760 = vld [vmem:[#allocation3 + $0x10] sm:$0xff]
        %v761 = vld [vmem:[#allocation3 + $0x18] sm:$0xff]
        %v762 = vld [vmem:[#allocation3 + $0x20] sm:$0xff]
        %v763 = vld [vmem:[#allocation3 + $0x28] sm:$0xff]
        %v764 = vld [vmem:[#allocation3 + $0x30] sm:$0xff]
        %v765 = vld [vmem:[#allocation3 + $0x38] sm:$0xff]
        %v766 = vld [vmem:[#allocation3 + $0x40] sm:$0xff]
        %v767 = vld [vmem:[#allocation3 + $0x48] sm:$0xff]
        %v768 = vld [vmem:[#allocation3 + $0x50] sm:$0xff]
        %v769 = vld [vmem:[#allocation3 + $0x58] sm:$0xff]
        %v770 = vld [vmem:[#allocation3 + $0x60] sm:$0xff]
        %v771 = vld [vmem:[#allocation3 + $0x68] sm:$0xff]
        %v772 = vld [vmem:[#allocation3 + $0x70] sm:$0xff]
        %v773 = vld [vmem:[#allocation3 + $0x78] sm:$0xff]
        %v774 = vld [vmem:[#allocation3 + $0x80] sm:$0xf]
        %v775 = vld [vmem:[#allocation3 + $0x88] sm:$0xf]
        %v776 = vld [vmem:[#allocation3 + $0x90] sm:$0xf]
        %v777 = vld [vmem:[#allocation3 + $0x98] sm:$0xf]
        %v778 = vld [vmem:[%s2] sm:$0xff]
        %780 = vset.pattern.permute.xlu0 0
        %781 = vperm.xlu0 %780, %v778
        %v782 = vpop.permute.xlu0 %781
        %vm784 = vcmask 293888
        %v786 = vsel %vm784, %v757, 0
        %v789 = vsel %vm271, %v774, 0
        %v792 = vsel %vm271, %v775, 0
        %v795 = vsel %vm271, %v776, 0
        %v798 = vsel %vm271, %v777, 0
        %800 = vmatprep.subr.mxu0 %v759
        %801 = vmatpush1.msra.mxu0 %v758
        %802 = vmatprep.subr.mxu0 %v763
        %803 = vmatpush1.msra.mxu0 %v762
        %804 = vmatprep.subr.mxu0 %v767
        %805 = vmatpush1.msra.mxu0 %v766
        %806 = vmatprep.subr.mxu0 %v771
        %807 = vmatpush1.msra.mxu0 %v770
        %808 = vmatprep.subr.mxu0 %v792
        %809 = vmatpush1.msra.mxu0 %v789
        %810 = vmatprep.subr.mxu0 0.0
        %811 = vmatpush1.msra.mxu0 0.0
        %812 = vmatprep.subr.mxu0 0.0
        %813 = vmatpush1.msra.mxu0 0.0
        %814 = vmatprep.subr.mxu0 0.0
        %815 = vmatpush1.msra.mxu0 0.0
        %816 = vmatprep.subr.mxu0 0.0
        %817 = vmatpush1.msra.mxu0 0.0
        %818 = vmatprep.subr.mxu0 0.0
        %819 = vmatpush1.msra.mxu0 0.0
        %820 = vmatprep.subr.mxu0 0.0
        %821 = vmatpush1.msra.mxu0 0.0
        %822 = vmatprep.subr.mxu0 0.0
        %823 = vmatpush1.msra.mxu0 0.0
        %824 = vmatprep.subr.mxu0 0.0
        %825 = vmatpush1.msra.mxu0 0.0
        %826 = vmatprep.subr.mxu0 0.0
        %827 = vmatpush1.msra.mxu0 0.0
        %828 = vmatprep.subr.mxu0 0.0
        %829 = vmatpush1.msra.mxu0 0.0
        %830 = vmatprep.subr.mxu0 0.0
        %831 = vmatpush1.msra.mxu0 0.0
        %832 = vmatprep.subr.mxu0 0.0
        %833 = vmatpush1.msra.mxu0 0.0
        %834 = vmatprep.subr.mxu0 0.0
        %835 = vmatpush1.msra.mxu0 0.0
        %836 = vmatprep.subr.mxu0 0.0
        %837 = vmatpush1.msra.mxu0 0.0
        %838 = vmatprep.subr.mxu0 0.0
        %839 = vmatpush1.msra.mxu0 0.0
        %840 = vmatprep.subr.mxu0 0.0
        %841 = vmatpush1.msra.mxu0 0.0
        %842 = vmatprep.subr.mxu0 0.0
        %843 = vmatpush1.msra.mxu0 0.0
        %844 = vmatprep.subr.mxu0 0.0
        %845 = vmatpush1.msra.mxu0 0.0
        %846 = vmatprep.subr.mxu0 0.0
        %847 = vmatpush1.msra.mxu0 0.0
        %848 = vmatprep.subr.mxu0 0.0
        %849 = vmatpush1.msra.mxu0 0.0
        %850 = vmatprep.subr.mxu0 0.0
        %851 = vmatpush1.msra.mxu0 0.0
        %852 = vmatprep.subr.mxu0 0.0
        %853 = vmatpush1.msra.mxu0 0.0
        %854 = vmatprep.subr.mxu0 0.0
        %855 = vmatpush1.msra.mxu0 0.0
        %856 = vmatprep.subr.mxu0 0.0
        %857 = vmatpush1.msra.mxu0 0.0
        %858 = vmatprep.subr.mxu0 0.0
        %859 = vmatpush1.msra.mxu0 0.0
        %860 = vmatprep.subr.mxu0 0.0
        %861 = vmatpush1.msra.mxu0 0.0
        %862 = vmatprep.subr.mxu0 0.0
        %863 = vmatpush1.msra.mxu0 0.0
        %864 = vmatprep.mubr.f32.mxu0 0.0
        %865 = vmatmul.mubr.f32.gmra.mrb[0].mxu0 %v786
        %v866 = vpop.f32.mrb[0].mxu0
        %v867 = vadd.f32 %v782, %v866
        %v868 = vpop.f32.mrb[0].mxu0
        %v869 = vadd.f32 %v782, %v868
        %870 = vdwg.mxu0
        %871 = vmatprep.subr.mxu0 %v761
        %872 = vmatpush1.msra.mxu0 %v760
        %873 = vmatprep.subr.mxu0 %v765
        %874 = vmatpush1.msra.mxu0 %v764
        %875 = vmatprep.subr.mxu0 %v769
        %876 = vmatpush1.msra.mxu0 %v768
        %877 = vmatprep.subr.mxu0 %v773
        %878 = vmatpush1.msra.mxu0 %v772
        %879 = vmatprep.subr.mxu0 %v798
        %880 = vmatpush1.msra.mxu0 %v795
        %881 = vmatprep.subr.mxu0 0.0
        %882 = vmatpush1.msra.mxu0 0.0
        %883 = vmatprep.subr.mxu0 0.0
        %884 = vmatpush1.msra.mxu0 0.0
        %885 = vmatprep.subr.mxu0 0.0
        %886 = vmatpush1.msra.mxu0 0.0
        %887 = vmatprep.subr.mxu0 0.0
        %888 = vmatpush1.msra.mxu0 0.0
        %889 = vmatprep.subr.mxu0 0.0
        %890 = vmatpush1.msra.mxu0 0.0
        %891 = vmatprep.subr.mxu0 0.0
        %892 = vmatpush1.msra.mxu0 0.0
        %893 = vmatprep.subr.mxu0 0.0
        %894 = vmatpush1.msra.mxu0 0.0
        %895 = vmatprep.subr.mxu0 0.0
        %896 = vmatpush1.msra.mxu0 0.0
        %897 = vmatprep.subr.mxu0 0.0
        %898 = vmatpush1.msra.mxu0 0.0
        %899 = vmatprep.subr.mxu0 0.0
        %900 = vmatpush1.msra.mxu0 0.0
        %901 = vmatprep.subr.mxu0 0.0
        %902 = vmatpush1.msra.mxu0 0.0
        %903 = vmatprep.subr.mxu0 0.0
        %904 = vmatpush1.msra.mxu0 0.0
        %905 = vmatprep.subr.mxu0 0.0
        %906 = vmatpush1.msra.mxu0 0.0
        %907 = vmatprep.subr.mxu0 0.0
        %908 = vmatpush1.msra.mxu0 0.0
        %909 = vmatprep.subr.mxu0 0.0
        %910 = vmatpush1.msra.mxu0 0.0
        %911 = vmatprep.subr.mxu0 0.0
        %912 = vmatpush1.msra.mxu0 0.0
        %913 = vmatprep.subr.mxu0 0.0
        %914 = vmatpush1.msra.mxu0 0.0
        %915 = vmatprep.subr.mxu0 0.0
        %916 = vmatpush1.msra.mxu0 0.0
        %917 = vmatprep.subr.mxu0 0.0
        %918 = vmatpush1.msra.mxu0 0.0
        %919 = vmatprep.subr.mxu0 0.0
        %920 = vmatpush1.msra.mxu0 0.0
        %921 = vmatprep.subr.mxu0 0.0
        %922 = vmatpush1.msra.mxu0 0.0
        %923 = vmatprep.subr.mxu0 0.0
        %924 = vmatpush1.msra.mxu0 0.0
        %925 = vmatprep.subr.mxu0 0.0
        %926 = vmatpush1.msra.mxu0 0.0
        %927 = vmatprep.subr.mxu0 0.0
        %928 = vmatpush1.msra.mxu0 0.0
        %929 = vmatprep.subr.mxu0 0.0
        %930 = vmatpush1.msra.mxu0 0.0
        %931 = vmatprep.subr.mxu0 0.0
        %932 = vmatpush1.msra.mxu0 0.0
        %933 = vmatprep.subr.mxu0 0.0
        %934 = vmatpush1.msra.mxu0 0.0
        %935 = vmatprep.mubr.f32.mxu0 0.0
        %936 = vmatmul.mubr.f32.gmra.mrb[0].mxu0 %v786
        %v937 = vpop.f32.mrb[0].mxu0
        %v938 = vadd.f32 %v782, %v937
        %v939 = vpop.f32.mrb[0].mxu0
        %v940 = vadd.f32 %v782, %v939
        %941 = vdwg.mxu0
        %v942 = vmax.f32 %v867, 0.0
        %v943 = vmax.f32 %v869, 0.0
        %v944 = vmax.f32 %v938, 0.0
        %v945 = vmax.f32 %v940, 0.0
        %v946 = vmin.f32 %v942, 6.0
        %v947 = vmin.f32 %v943, 6.0
        %v948 = vmin.f32 %v944, 6.0
        %v949 = vmin.f32 %v945, 6.0
        %v950 = vld [vmem:[%s3] sm:$0xf]
        %v952 = vlaneseq
        %v953 = vshrl.u32 %v952, 7
        %v954 = vsub.s32 0, %v953
        %v955 = vrot.slane %v950, %v954
        %v956 = vlaneseq
        %v957 = vshrl.u32 %v956, 7
        %v958 = vsub.s32 1, %v957
        %v959 = vrot.slane %v950, %v958
        %v960 = vlaneseq
        %v961 = vshrl.u32 %v960, 7
        %v962 = vsub.s32 2, %v961
        %v963 = vrot.slane %v950, %v962
        %v964 = vlaneseq
        %v965 = vshrl.u32 %v964, 7
        %v966 = vsub.s32 3, %v965
        %v967 = vrot.slane %v950, %v966
        %v972 = vmul.f32 %v946, %v955
        %v973 = vmul.f32 %v947, %v959
        %v974 = vmul.f32 %v948, %v963
        %v975 = vmul.f32 %v949, %v967
        %976 = vst [vmem:[#allocation4] sm:$0xff] %v972
        %977 = vst [vmem:[#allocation4 + $0x8] sm:$0xff] %v973
        %978 = vst [vmem:[#allocation4 + $0x10] sm:$0xff] %v974
        %vm979 = vcmask 130048
        %980 = vst.msk [vmem:[#allocation4 + $0x18] sm:$0xff] %vm979, %v975
        %vm981 = vcmask 474240
        %982 = vst.msk [vmem:[#allocation4 + $0x18] sm:$0xff] %vm981, 0.0
        %v983 = vld [vmem:[%s4] sm:$0xff]
        %v984 = vld [vmem:[#allocation4] sm:$0xff]
        %v985 = vld [vmem:[#allocation4 + $0x8] sm:$0xff]
        %v986 = vld [vmem:[#allocation4 + $0x10] sm:$0xff]
        %988 = vset.pattern.permute.xlu0 0
        %989 = vperm.xlu0 %988, %v983
        %v990 = vpop.permute.xlu0 %989
        %v992 = vmul.f32 %v990, %v984
        %v993 = vmul.f32 %v990, %v985
        %v994 = vmul.f32 %v990, %v986
        %v995 = vadd.f32 %v992, 0.0
        %v996 = vadd.f32 %v993, 0.0
        %v997 = vadd.f32 %v994, 0.0
        %v998 = vld [vmem:[#allocation4 + $0x18] sm:$0xff]
        %999 = vset.pattern.permute.xlu0 1
        %1000 = vperm.xlu0 %999, %v983
        %v1001 = vpop.permute.xlu0 %1000
        %v1003 = vmul.f32 %v1001, %v984
        %v1004 = vmul.f32 %v1001, %v985
        %v1005 = vmul.f32 %v1001, %v986
        %v1006 = vmul.f32 %v1001, %v998
        %1011 = vrot.lane.b32.xlu0 %v1003, 127
        %v1012 = vpop.permute.xlu0 %1011
        %1013 = vrot.lane.b32.xlu0 %v1004, 127
        %v1014 = vpop.permute.xlu0 %1013
        %1015 = vrot.lane.b32.xlu0 %v1005, 127
        %v1016 = vpop.permute.xlu0 %1015
        %1017 = vrot.lane.b32.xlu0 %v1006, 127
        %v1018 = vpop.permute.xlu0 %1017
        %vm1019 = vcmask 1039360
        %v1020 = vsel %vm1019, %v1012, %v1014
        %v1021 = vsel %vm1019, %v1014, %v1016
        %v1022 = vsel %vm1019, %v1016, %v1018
        %v1026 = vadd.f32 %v995, %v1020
        %v1027 = vadd.f32 %v996, %v1021
        %v1028 = vadd.f32 %v997, %v1022
        %1029 = vset.pattern.permute.xlu0 2
        %1030 = vperm.xlu0 %1029, %v983
        %v1031 = vpop.permute.xlu0 %1030
        %v1033 = vmul.f32 %v1031, %v984
        %v1034 = vmul.f32 %v1031, %v985
        %v1035 = vmul.f32 %v1031, %v986
        %v1036 = vmul.f32 %v1031, %v998
        %1041 = vrot.lane.b32.xlu0 %v1033, 126
        %v1042 = vpop.permute.xlu0 %1041
        %1043 = vrot.lane.b32.xlu0 %v1034, 126
        %v1044 = vpop.permute.xlu0 %1043
        %1045 = vrot.lane.b32.xlu0 %v1035, 126
        %v1046 = vpop.permute.xlu0 %1045
        %1047 = vrot.lane.b32.xlu0 %v1036, 126
        %v1048 = vpop.permute.xlu0 %1047
        %v1049 = vsel %vm563, %v1042, %v1044
        %v1050 = vsel %vm563, %v1044, %v1046
        %v1051 = vsel %vm563, %v1046, %v1048
        %v1055 = vadd.f32 %v1026, %v1049
        %v1056 = vadd.f32 %v1027, %v1050
        %v1057 = vadd.f32 %v1028, %v1051
        %1058 = vset.pattern.permute.xlu0 3
        %1059 = vperm.xlu0 %1058, %v983
        %v1060 = vpop.permute.xlu0 %1059
        %v1062 = vmul.f32 %v1060, %v984
        %v1063 = vmul.f32 %v1060, %v985
        %v1064 = vmul.f32 %v1060, %v986
        %v1065 = vmul.f32 %v1060, %v998
        %1070 = vrot.lane.b32.xlu0 %v1062, 108
        %v1071 = vpop.permute.xlu0 %1070
        %1072 = vrot.lane.b32.xlu0 %v1063, 108
        %v1073 = vpop.permute.xlu0 %1072
        %1074 = vrot.lane.b32.xlu0 %v1064, 108
        %v1075 = vpop.permute.xlu0 %1074
        %1076 = vrot.lane.b32.xlu0 %v1065, 108
        %v1077 = vpop.permute.xlu0 %1076
        %vm1078 = vcmask 883712
        %v1079 = vsel %vm1078, %v1071, %v1073
        %v1080 = vsel %vm1078, %v1073, %v1075
        %v1081 = vsel %vm1078, %v1075, %v1077
        %v1085 = vadd.f32 %v1055, %v1079
        %v1086 = vadd.f32 %v1056, %v1080
        %v1087 = vadd.f32 %v1057, %v1081
        %1088 = vset.pattern.permute.xlu0 4
        %1089 = vperm.xlu0 %1088, %v983
        %v1090 = vpop.permute.xlu0 %1089
        %v1092 = vmul.f32 %v1090, %v984
        %v1093 = vmul.f32 %v1090, %v985
        %v1094 = vmul.f32 %v1090, %v986
        %v1095 = vmul.f32 %v1090, %v998
        %1100 = vrot.lane.b32.xlu0 %v1092, 107
        %v1101 = vpop.permute.xlu0 %1100
        %1102 = vrot.lane.b32.xlu0 %v1093, 107
        %v1103 = vpop.permute.xlu0 %1102
        %1104 = vrot.lane.b32.xlu0 %v1094, 107
        %v1105 = vpop.permute.xlu0 %1104
        %1106 = vrot.lane.b32.xlu0 %v1095, 107
        %v1107 = vpop.permute.xlu0 %1106
        %vm1108 = vcmask 875520
        %v1109 = vsel %vm1108, %v1101, %v1103
        %v1110 = vsel %vm1108, %v1103, %v1105
        %v1111 = vsel %vm1108, %v1105, %v1107
        %v1115 = vadd.f32 %v1085, %v1109
        %v1116 = vadd.f32 %v1086, %v1110
        %v1117 = vadd.f32 %v1087, %v1111
        %1118 = vset.pattern.permute.xlu0 5
        %1119 = vperm.xlu0 %1118, %v983
        %v1120 = vpop.permute.xlu0 %1119
        %v1122 = vmul.f32 %v1120, %v984
        %v1123 = vmul.f32 %v1120, %v985
        %v1124 = vmul.f32 %v1120, %v986
        %v1125 = vmul.f32 %v1120, %v998
        %1130 = vrot.lane.b32.xlu0 %v1122, 106
        %v1131 = vpop.permute.xlu0 %1130
        %1132 = vrot.lane.b32.xlu0 %v1123, 106
        %v1133 = vpop.permute.xlu0 %1132
        %1134 = vrot.lane.b32.xlu0 %v1124, 106
        %v1135 = vpop.permute.xlu0 %1134
        %1136 = vrot.lane.b32.xlu0 %v1125, 106
        %v1137 = vpop.permute.xlu0 %1136
        %vm1138 = vcmask 867328
        %v1139 = vsel %vm1138, %v1131, %v1133
        %v1140 = vsel %vm1138, %v1133, %v1135
        %v1141 = vsel %vm1138, %v1135, %v1137
        %v1145 = vadd.f32 %v1115, %v1139
        %v1146 = vadd.f32 %v1116, %v1140
        %v1147 = vadd.f32 %v1117, %v1141
        %1148 = vset.pattern.permute.xlu0 6
        %1149 = vperm.xlu0 %1148, %v983
        %v1150 = vpop.permute.xlu0 %1149
        %v1152 = vmul.f32 %v1150, %v984
        %v1153 = vmul.f32 %v1150, %v985
        %v1154 = vmul.f32 %v1150, %v986
        %v1155 = vmul.f32 %v1150, %v998
        %1160 = vrot.lane.b32.xlu0 %v1152, 88
        %v1161 = vpop.permute.xlu0 %1160
        %1162 = vrot.lane.b32.xlu0 %v1153, 88
        %v1163 = vpop.permute.xlu0 %1162
        %1164 = vrot.lane.b32.xlu0 %v1154, 88
        %v1165 = vpop.permute.xlu0 %1164
        %1166 = vrot.lane.b32.xlu0 %v1155, 88
        %v1167 = vpop.permute.xlu0 %1166
        %v1168 = vsel %vm615, %v1161, %v1163
        %v1169 = vsel %vm615, %v1163, %v1165
        %v1170 = vsel %vm615, %v1165, %v1167
        %v1174 = vadd.f32 %v1145, %v1168
        %v1175 = vadd.f32 %v1146, %v1169
        %v1176 = vadd.f32 %v1147, %v1170
        %1177 = vset.pattern.permute.xlu0 7
        %1178 = vperm.xlu0 %1177, %v983
        %v1179 = vpop.permute.xlu0 %1178
        %v1181 = vmul.f32 %v1179, %v984
        %v1182 = vmul.f32 %v1179, %v985
        %v1183 = vmul.f32 %v1179, %v986
        %v1184 = vmul.f32 %v1179, %v998
        %1189 = vrot.lane.b32.xlu0 %v1181, 87
        %v1190 = vpop.permute.xlu0 %1189
        %1191 = vrot.lane.b32.xlu0 %v1182, 87
        %v1192 = vpop.permute.xlu0 %1191
        %1193 = vrot.lane.b32.xlu0 %v1183, 87
        %v1194 = vpop.permute.xlu0 %1193
        %1195 = vrot.lane.b32.xlu0 %v1184, 87
        %v1196 = vpop.permute.xlu0 %1195
        %vm1197 = vcmask 711680
        %v1198 = vsel %vm1197, %v1190, %v1192
        %v1199 = vsel %vm1197, %v1192, %v1194
        %v1200 = vsel %vm1197, %v1194, %v1196
        %v1204 = vadd.f32 %v1174, %v1198
        %v1205 = vadd.f32 %v1175, %v1199
        %v1206 = vadd.f32 %v1176, %v1200
        %1207 = vset.pattern.permute.xlu0 8
        %1208 = vperm.xlu0 %1207, %v983
        %v1209 = vpop.permute.xlu0 %1208
        %v1211 = vmul.f32 %v1209, %v984
        %v1212 = vmul.f32 %v1209, %v985
        %v1213 = vmul.f32 %v1209, %v986
        %v1214 = vmul.f32 %v1209, %v998
        %1219 = vrot.lane.b32.xlu0 %v1211, 86
        %v1220 = vpop.permute.xlu0 %1219
        %1221 = vrot.lane.b32.xlu0 %v1212, 86
        %v1222 = vpop.permute.xlu0 %1221
        %1223 = vrot.lane.b32.xlu0 %v1213, 86
        %v1224 = vpop.permute.xlu0 %1223
        %1225 = vrot.lane.b32.xlu0 %v1214, 86
        %v1226 = vpop.permute.xlu0 %1225
        %v1227 = vsel %vm641, %v1220, %v1222
        %v1228 = vsel %vm641, %v1222, %v1224
        %v1229 = vsel %vm641, %v1224, %v1226
        %v1233 = vadd.f32 %v1204, %v1227
        %v1234 = vadd.f32 %v1205, %v1228
        %v1235 = vadd.f32 %v1206, %v1229
        %v1236 = vld [vmem:[%s5] sm:$0xff]
        %1238 = vset.pattern.permute.xlu0 0
        %1239 = vperm.xlu0 %1238, %v1236
        %v1240 = vpop.permute.xlu0 %1239
        %v1242 = vadd.f32 %v1233, %v1240
        %v1243 = vadd.f32 %v1234, %v1240
        %v1244 = vadd.f32 %v1235, %v1240
        %v1245 = vmax.f32 %v1242, 0.0
        %v1246 = vmax.f32 %v1243, 0.0
        %v1247 = vmax.f32 %v1244, 0.0
        %v1248 = vmin.f32 %v1245, 6.0
        %v1249 = vmin.f32 %v1246, 6.0
        %v1250 = vmin.f32 %v1247, 6.0
        %1251 = vst [vmem:[%s269] sm:$0xff] %v1248
        %1252 = vst [vmem:[%s269 + $0x8] sm:$0xff] %v1249
        %vm1253 = vcmask 850944
        %1254 = vst.msk [vmem:[%s269 + $0x10] sm:$0xff] %vm1253, %v1250
        %s1255 = sand.u32 %s162, 1
        %s1256 = scalar_lea.sflag [#allocation7], %s1255
        %s1257 = sand.u32 %s162, 1
        %s1258 = smul.addr %s1257, 24
        %s1259 = scalar_lea.vmem [#allocation8], %s1258
        // Predicated region
        $region49: #{tpu_custom_call.1} parent=43 // pred_check
          %p1260 = pneg %p172
        $region50: #{tpu_custom_call.1} parent=43 // pred_check_branch
          %1262 = sbr.rel (%p1260) target = $region52
        $region51: #{tpu_custom_call.1} parent=43 // pred_region
          %s1264 = ssub.s32 384, 384
          %1265 = vsyncadd %s1256, %s1264
          %s1266 = smul.addr %s23, 3
          %s1267 = smul.addr %s1266, 128
          %s1268 = scalar_lea.hbm %s6, %s1267
          %s1270 = sshll.u32 %s1259, 4
          %s1271 = int_to_ptr.vmem [resolvable:$true] %s1270
          %1273 = dma.vmem_to_hbm [thread:$0]  %s1271, 384, %s1268, %s1256
        $region52: #{tpu_custom_call.1} parent=43 // pred_fallthru
          _
      $region44: #{tpu_custom_call.1} parent=5 // pred_fallthru
        _
      %p1274 = scmp.le.s32.totalorder 2, %s18
      // Predicated region
      $region53: #{tpu_custom_call.1} parent=5 // pred_check
        %p1275 = pneg %p1274
      $region54: #{tpu_custom_call.1} parent=5 // pred_check_branch
        %1277 = sbr.rel (%p1275) target = $region56
      $region55: #{tpu_custom_call.1} parent=5 // pred_region
        %s1278 = ssub.s32 %s18, 2
        // Predicated region
        $region57: #{tpu_custom_call.1} parent=55 // pred_check
          %p1279 = pneg %p178
        $region58: #{tpu_custom_call.1} parent=55 // pred_check_branch
          %1281 = sbr.rel (%p1279) target = $region60
        $region59: #{tpu_custom_call.1} parent=55 // pred_region
          %s1282 = sand.u32 %s163, 1
          %s1283 = scalar_lea.sflag [#allocation7], %s1282
          %s1284 = sand.u32 %s163, 1
          %s1285 = smul.addr %s1284, 24
          %s1286 = scalar_lea.vmem [#allocation8], %s1285
          %1287 = dma.done %s1283, 384
        $region60: #{tpu_custom_call.1} parent=55 // pred_fallthru
          _
      $region56: #{tpu_custom_call.1} parent=5 // pred_fallthru
        _
    $region6: #{tpu_custom_call.1} parent=1 // loop_footer
      %s22 = sadd.s32 1, %s18
    $region7: #{tpu_custom_call.1} parent=1 // loop_footer_branch
      %17 = sbr.rel target = $region3
    $region8: #{tpu_custom_call.1} parent=1 // loop_exit
      _
    %1288 = vsyncpa [#allocation6], 1
    %s1289 = scalar_lea.sflag [#allocation6], 1
    %1290 = vsyncpa %s1289, 1
    %1291 = vsyncpa [#allocation7], 1
    %s1292 = scalar_lea.sflag [#allocation7], 1
    %1293 = vsyncpa %s1292, 1

</llo_original>
